<compile_context>
chip_gen: v7x
topology: tpu7x:2x2x1
jax: 0.10.0
libtpu: 0.0.40
codegen_flags: <defaults>
</compile_context>

<pallas_src>
import functools
import math

import jax
import jax.numpy as jnp
from jax.experimental import pallas as pl
from jax.experimental.pallas import tpu as pltpu

BINS = 50
MIN_V = 0.0
MAX_V = 1.0
SIGMA = 10.0
EPS = 1e-8

# Multiple of 128. Per-step VMEM with f32 elementwise temporaries + bf16 matmul inputs
# is ~15 MB worst case at 16384, comfortably under the explicit 32 MiB scoped limit on
# v5e/v6e/v7x.
D_TILE_MAX = 16384


def _round_up(v, m):
    return ((v + m - 1) // m) * m


def _hist2d_kernel(x_ref, y_ref, out_ref, acc_ref, *, sigma, delta, min_v,
                   bins, bins_pad, d_valid, d_tile, mxu_dtype, mxu_precision):
    """Accumulates the (bins_pad, bins_pad) soft 2D histogram for one image.

    grid = (batch, d_tiles). x_ref/y_ref: (1, 1, d_tile) chunk of the flattened image;
    out_ref: (1, bins_pad, bins_pad) per-image histogram (block resident across the
    d axis); acc_ref: f32 VMEM accumulator.
    """
    k = pl.program_id(1)

    @pl.when(k == 0)
    def _():
        acc_ref[...] = jnp.zeros_like(acc_ref)

    x = x_ref[0]  # (1, d_tile)
    y = y_ref[0]  # (1, d_tile)

    # Per-bin vectors, generated in-kernel (no DMA'd centers input).
    row_idx = jax.lax.broadcasted_iota(jnp.int32, (bins_pad, 1), 0)
    sc = sigma * (min_v + delta * (row_idx.astype(jnp.float32) + 0.5))  # sigma * centers
    ep_c = jnp.exp(sc)       # exp(+sigma*c), (bins_pad, 1)
    em_c = jnp.exp(-sc)      # exp(-sigma*c)
    row_valid = row_idx < bins
    # Mask off the zero-padded tail of the flattened image (global d index >= d_valid).
    col = jax.lax.broadcasted_iota(jnp.int32, (1, d_tile), 1) + k * d_tile
    col_valid = col < d_valid

    # sigmoid(a + h) - sigmoid(a - h) == 2*sinh(h) / (exp(a) + exp(-a) + 2*cosh(h)),
    # with a = sigma*(v - c), h = sigma*delta/2.  exp(±a) factor into a per-pixel exp
    # times a per-bin exp -> only O(d_tile + bins_pad) EUP exps per grid step.
    kc = math.exp(-sigma * delta * 0.5)
    c_num = (1.0 / kc) - kc      # 2*sinh(h)
    c_den = (1.0 / kc) + kc      # 2*cosh(h)

    def weights(v, mask):
        em_v = jnp.exp(-sigma * v)           # (1, d_tile)
        ep_v = jnp.exp(sigma * v)            # (1, d_tile)
        e = ep_c * em_v                      # (bins_pad, d_tile) == exp(-a)
        e_inv = em_c * ep_v                  # (bins_pad, d_tile) == exp(+a)
        den = e + e_inv + c_den
        r = pl.reciprocal(den, approx=True)  # single EUP pass
        r = r * (2.0 - den * r)              # one Newton step (VPU FMAs) -> ~f32 accuracy
        w = jnp.where(mask, c_num * r, 0.0)
        return w.astype(mxu_dtype)

    wx = weights(x, jnp.logical_and(row_valid, col_valid))  # d-mask only needed on one side
    wy = weights(y, row_valid)

    # wx @ wy.T (contract over d) on the MXU; f32 accumulation.
    acc_ref[...] += jax.lax.dot_general(
        wx, wy, (((1,), (1,)), ((), ())),
        preferred_element_type=jnp.float32,
        precision=mxu_precision)

    @pl.when(k == pl.num_programs(1) - 1)
    def _():
        out_ref[...] = acc_ref[...][None]


def _mi_kernel(hgram_ref, out_ref, *, eps):
    # hgram_ref: (N, bins_pad, bins_pad). Padded rows/cols are exactly zero, so they
    # contribute 0 to the total, the marginals, and every pxy*log(...) term.
    h = hgram_ref[...]
    inv_total = 1.0 / jnp.sum(h)                 # one reciprocal, then a VPU multiply
    pxy = h * inv_total                          # (N, bins_pad, bins_pad)
    py = jnp.sum(pxy, axis=1)                    # (N, bins_pad)  == torch sum(dim=1)
    px = jnp.sum(pxy, axis=2)                    # (N, bins_pad)  == torch sum(dim=2)
    px_py = px[:, :, None] * py[:, None, :]      # outer product per batch element
    terms = pxy * (jnp.log(pxy + eps) - jnp.log(px_py + eps))
    out_ref[...] = jnp.reshape(-jnp.sum(terms), (1, 1))


def mi_pytorch_pallas(im1, im2, bins=BINS, min_v=MIN_V, max_v=MAX_V, sigma=SIGMA,
                      mxu_input_dtype=jnp.bfloat16):
    assert im1.shape == im2.shape, "(MI_pytorch) Inputs should have the same dimensions."
    n = im1.shape[0]
    # TODO(synk): the batch_size == 1 boolean-mask branch (Pxy[nzs]) is not implemented;
    #             this wrapper implements the batch_size > 1 path (eps-regularized logs).
    assert n > 1

    x = im1.reshape(n, -1).astype(jnp.float32)
    y = im2.reshape(n, -1).astype(jnp.float32)
    d = x.shape[1]

    # Sublane-aligned bin count (50 -> 56); padded bins masked to zero in-kernel.
    bins_pad = _round_up(bins, 8)
    delta = float(max_v - min_v) / float(bins)

    # Minimal-waste tiling of the flattened image dimension: split d into
    # ceil(d / D_TILE_MAX) tiles of (128-aligned) equal size -> < 128 padded columns.
    num_d_tiles = -(-d // D_TILE_MAX)
    d_tile = _round_up(-(-d // num_d_tiles), 128)
    d_pad = num_d_tiles * d_tile
    if d_pad != d:
        x = jnp.pad(x, ((0, 0), (0, d_pad - d)))
        y = jnp.pad(y, ((0, 0), (0, d_pad - d)))
    x3 = x.reshape(n, 1, d_pad)
    y3 = y.reshape(n, 1, d_pad)

    # bf16 MXU inputs -> single-pass matmul; if f32 is requested, HIGH (3-pass) keeps
    # f32-level accuracy at half the passes of HIGHEST.
    mxu_precision = (jax.lax.Precision.HIGH if mxu_input_dtype == jnp.float32
                     else jax.lax.Precision.DEFAULT)

    hist_fn = pl.pallas_call(
        functools.partial(
            _hist2d_kernel, sigma=float(sigma), delta=delta, min_v=float(min_v),
            bins=bins, bins_pad=bins_pad, d_valid=d, d_tile=d_tile,
            mxu_dtype=mxu_input_dtype, mxu_precision=mxu_precision),
        out_shape=jax.ShapeDtypeStruct((n, bins_pad, bins_pad), jnp.float32),
        grid=(n, num_d_tiles),
        in_specs=[
            pl.BlockSpec((1, 1, d_tile), lambda i, k: (i, 0, k)),  # x chunk
            pl.BlockSpec((1, 1, d_tile), lambda i, k: (i, 0, k)),  # y chunk
        ],
        out_specs=pl.BlockSpec((1, bins_pad, bins_pad), lambda i, k: (i, 0, 0)),
        scratch_shapes=[pltpu.VMEM((bins_pad, bins_pad), jnp.float32)],
        compiler_params=pltpu.CompilerParams(
            dimension_semantics=("parallel", "arbitrary"),
            vmem_limit_bytes=32 * 1024 * 1024),
    )
    hgram = hist_fn(x3, y3)

    # Tiny reduction kept as its own kernel (fusing into the histogram grid would break
    # the batch-parallel sharding on 2-TC chips).
    mi_fn = pl.pallas_call(
        functools.partial(_mi_kernel, eps=EPS),
        out_shape=jax.ShapeDtypeStruct((1, 1), jnp.float32),
        grid=(1,),
        in_specs=[pl.BlockSpec((n, bins_pad, bins_pad), lambda i: (0, 0, 0))],
        out_specs=pl.BlockSpec((1, 1), lambda i: (0, 0)),
    )
    return mi_fn(hgram)[0, 0]


def mi_reference(im1, im2, bins=BINS, min_v=MIN_V, max_v=MAX_V, sigma=SIGMA):
    """Pure-JAX reference mirroring the PyTorch forward (batch > 1 branch, f32 HIGHEST)."""
    n = im1.shape[0]
    x = im1.reshape(n, -1).astype(jnp.float32)
    y = im2.reshape(n, -1).astype(jnp.float32)
    delta = float(max_v - min_v) / float(bins)
    centers = float(min_v) + delta * (jnp.arange(bins, dtype=jnp.float32) + 0.5)
    dx = x[:, None, :] - centers[None, :, None]
    dy = y[:, None, :] - centers[None, :, None]
    wx = jax.nn.sigmoid(sigma * (dx + delta / 2)) - jax.nn.sigmoid(sigma * (dx - delta / 2))
    wy = jax.nn.sigmoid(sigma * (dy + delta / 2)) - jax.nn.sigmoid(sigma * (dy - delta / 2))
    hgram = jnp.einsum("nbd,ncd->nbc", wx, wy, precision=jax.lax.Precision.HIGHEST)
    pxy = hgram / jnp.sum(hgram)
    py = jnp.sum(pxy, axis=1)
    px = jnp.sum(pxy, axis=2)
    px_py = px[:, :, None] * py[:, None, :]
    mut = jnp.sum(pxy * (jnp.log(pxy + EPS) - jnp.log(px_py + EPS)))
    return -mut


if __name__ == "__main__":
    key = jax.random.PRNGKey(0)
    k1, k2 = jax.random.split(key)
    # N x C x H x W, values in [0, 1] (histogram range).
    im1 = jax.random.uniform(k1, (2, 4, 16, 16), dtype=jnp.float32)
    im2 = jax.random.uniform(k2, (2, 4, 16, 16), dtype=jnp.float32)

    out = jax.block_until_ready(mi_pytorch_pallas(im1, im2))
    ref = jax.block_until_ready(mi_reference(im1, im2))

    assert jnp.isfinite(out), out
    assert jnp.allclose(out, ref, rtol=1e-3, atol=1e-4), (out, ref)
    print("KERNEL_OK")
</pallas_src>

<mosaic_0001>
module attributes {stable_mosaic.version = 11 : i64} {
  func.func @_hist2d_kernel(%arg0: i32, %arg1: i32, %arg2: memref<1x1x1024xf32, #tpu.memory_space<vmem>>, %arg3: memref<1x1x1024xf32, #tpu.memory_space<vmem>>, %arg4: memref<1x56x56xf32, #tpu.memory_space<vmem>>, %arg5: memref<56x56xf32, #tpu.memory_space<vmem>>) attributes {dimension_semantics = [#tpu.dimension_semantics<parallel>, #tpu.dimension_semantics<arbitrary>], iteration_bounds = array<i64: 2, 1>, scalar_prefetch = 0 : i64, scratch_operands = 1 : i64, tpu.core_type = #tpu.core_type<tc>, window_params = [{transform_indices = @transform_0, window_bounds = array<i64: 1, 1, 1024>}, {transform_indices = @transform_1, window_bounds = array<i64: 1, 1, 1024>}, {transform_indices = @transform_2, window_bounds = array<i64: 1, 56, 56>}]} {
    %c0_i32 = arith.constant 0 : i32
    %0 = arith.cmpi eq, %arg1, %c0_i32 : i32
    %1 = arith.extui %0 : i1 to i32
    %c0_i32_0 = arith.constant 0 : i32
    %2 = arith.cmpi ne, %1, %c0_i32_0 : i32
    scf.if %2 {
      %cst_30 = arith.constant 0.000000e+00 : f32
      %91 = vector.broadcast %cst_30 : f32 to vector<56x56xf32>
      %c0_31 = arith.constant 0 : index
      %c0_32 = arith.constant 0 : index
      %92 = vector.load %arg5[%c0_31, %c0_32] : memref<56x56xf32, #tpu.memory_space<vmem>>, vector<56x56xf32>
      tpu.vector_store %arg5[%c0_31, %c0_32], %91 {strides = array<i32>} : memref<56x56xf32, #tpu.memory_space<vmem>>, vector<56x56xf32>,
    } else {
    }
    %c0 = arith.constant 0 : index
    %c0_1 = arith.constant 0 : index
    %c0_2 = arith.constant 0 : index
    %3 = vector.load %arg2[%c0, %c0_1, %c0_2] : memref<1x1x1024xf32, #tpu.memory_space<vmem>>, vector<1x1x1024xf32>
    %4 = vector.shape_cast %3 : vector<1x1x1024xf32> to vector<1x1024xf32>
    %c0_3 = arith.constant 0 : index
    %c0_4 = arith.constant 0 : index
    %c0_5 = arith.constant 0 : index
    %5 = vector.load %arg3[%c0_3, %c0_4, %c0_5] : memref<1x1x1024xf32, #tpu.memory_space<vmem>>, vector<1x1x1024xf32>
    %6 = vector.shape_cast %5 : vector<1x1x1024xf32> to vector<1x1024xf32>
    %7 = tpu.iota {dimensions = array<i32: 0>} : vector<56x1xi32>
    %8 = arith.sitofp %7 : vector<56x1xi32> to vector<56x1xf32>
    %cst = arith.constant 5.000000e-01 : f32
    %9 = vector.broadcast %cst : f32 to vector<56x1xf32>
    %10 = arith.addf %8, %9 : vector<56x1xf32>
    %cst_6 = arith.constant 2.000000e-02 : f32
    %11 = vector.broadcast %cst_6 : f32 to vector<56x1xf32>
    %12 = arith.mulf %11, %10 : vector<56x1xf32>
    %cst_7 = arith.constant 0.000000e+00 : f32
    %13 = vector.broadcast %cst_7 : f32 to vector<56x1xf32>
    %14 = arith.addf %13, %12 : vector<56x1xf32>
    %cst_8 = arith.constant 1.000000e+01 : f32
    %15 = vector.broadcast %cst_8 : f32 to vector<56x1xf32>
    %16 = arith.mulf %15, %14 : vector<56x1xf32>
    %17 = math.exp %16 : vector<56x1xf32>
    %cst_9 = arith.constant 0.000000e+00 : f32
    %18 = vector.broadcast %cst_9 : f32 to vector<56x1xf32>
    %19 = arith.subf %18, %16 : vector<56x1xf32>
    %20 = math.exp %19 : vector<56x1xf32>
    %c50_i32 = arith.constant 50 : i32
    %21 = vector.broadcast %c50_i32 : i32 to vector<56x1xi32>
    %22 = arith.cmpi slt, %7, %21 : vector<56x1xi32>
    %23 = tpu.iota {dimensions = array<i32: 1>} : vector<1x1024xi32>
    %c1024_i32 = arith.constant 1024 : i32
    %24 = arith.muli %arg1, %c1024_i32 : i32
    %25 = vector.broadcast %24 : i32 to vector<1x1024xi32>
    %26 = arith.addi %23, %25 : vector<1x1024xi32>
    %c1024_i32_10 = arith.constant 1024 : i32
    %27 = vector.broadcast %c1024_i32_10 : i32 to vector<1x1024xi32>
    %28 = arith.cmpi slt, %26, %27 : vector<1x1024xi32>
    %29 = vector.broadcast %22 : vector<56x1xi1> to vector<56x1024xi1>
    %30 = vector.broadcast %28 : vector<1x1024xi1> to vector<56x1024xi1>
    %31 = arith.andi %29, %30 : vector<56x1024xi1>
    %cst_11 = arith.constant -1.000000e+01 : f32
    %32 = vector.broadcast %cst_11 : f32 to vector<1x1024xf32>
    %33 = arith.mulf %32, %4 : vector<1x1024xf32>
    %34 = math.exp %33 : vector<1x1024xf32>
    %cst_12 = arith.constant 1.000000e+01 : f32
    %35 = vector.broadcast %cst_12 : f32 to vector<1x1024xf32>
    %36 = arith.mulf %35, %4 : vector<1x1024xf32>
    %37 = math.exp %36 : vector<1x1024xf32>
    %38 = vector.broadcast %17 : vector<56x1xf32> to vector<56x1024xf32>
    %39 = vector.broadcast %34 : vector<1x1024xf32> to vector<56x1024xf32>
    %40 = arith.mulf %38, %39 : vector<56x1024xf32>
    %41 = vector.broadcast %20 : vector<56x1xf32> to vector<56x1024xf32>
    %42 = vector.broadcast %37 : vector<1x1024xf32> to vector<56x1024xf32>
    %43 = arith.mulf %41, %42 : vector<56x1024xf32>
    %44 = arith.addf %40, %43 : vector<56x1024xf32>
    %cst_13 = arith.constant 2.01000834 : f32
    %45 = vector.broadcast %cst_13 : f32 to vector<56x1024xf32>
    %46 = arith.addf %44, %45 : vector<56x1024xf32>
    %47 = tpu.reciprocal %46 {approx = true} : vector<56x1024xf32> -> vector<56x1024xf32>
    %48 = arith.mulf %46, %47 : vector<56x1024xf32>
    %cst_14 = arith.constant 2.000000e+00 : f32
    %49 = vector.broadcast %cst_14 : f32 to vector<56x1024xf32>
    %50 = arith.subf %49, %48 : vector<56x1024xf32>
    %51 = arith.mulf %47, %50 : vector<56x1024xf32>
    %cst_15 = arith.constant 0.200333506 : f32
    %52 = vector.broadcast %cst_15 : f32 to vector<56x1024xf32>
    %53 = arith.mulf %52, %51 : vector<56x1024xf32>
    %cst_16 = arith.constant 0.000000e+00 : f32
    %54 = vector.broadcast %cst_16 : f32 to vector<56x1024xf32>
    %55 = arith.select %31, %53, %54 : vector<56x1024xi1>, vector<56x1024xf32>
    %56 = arith.truncf %55 : vector<56x1024xf32> to vector<56x1024xbf16>
    %cst_17 = arith.constant -1.000000e+01 : f32
    %57 = vector.broadcast %cst_17 : f32 to vector<1x1024xf32>
    %58 = arith.mulf %57, %6 : vector<1x1024xf32>
    %59 = math.exp %58 : vector<1x1024xf32>
    %cst_18 = arith.constant 1.000000e+01 : f32
    %60 = vector.broadcast %cst_18 : f32 to vector<1x1024xf32>
    %61 = arith.mulf %60, %6 : vector<1x1024xf32>
    %62 = math.exp %61 : vector<1x1024xf32>
    %63 = vector.broadcast %17 : vector<56x1xf32> to vector<56x1024xf32>
    %64 = vector.broadcast %59 : vector<1x1024xf32> to vector<56x1024xf32>
    %65 = arith.mulf %63, %64 : vector<56x1024xf32>
    %66 = vector.broadcast %20 : vector<56x1xf32> to vector<56x1024xf32>
    %67 = vector.broadcast %62 : vector<1x1024xf32> to vector<56x1024xf32>
    %68 = arith.mulf %66, %67 : vector<56x1024xf32>
    %69 = arith.addf %65, %68 : vector<56x1024xf32>
    %cst_19 = arith.constant 2.01000834 : f32
    %70 = vector.broadcast %cst_19 : f32 to vector<56x1024xf32>
    %71 = arith.addf %69, %70 : vector<56x1024xf32>
    %72 = tpu.reciprocal %71 {approx = true} : vector<56x1024xf32> -> vector<56x1024xf32>
    %73 = arith.mulf %71, %72 : vector<56x1024xf32>
    %cst_20 = arith.constant 2.000000e+00 : f32
    %74 = vector.broadcast %cst_20 : f32 to vector<56x1024xf32>
    %75 = arith.subf %74, %73 : vector<56x1024xf32>
    %76 = arith.mulf %72, %75 : vector<56x1024xf32>
    %cst_21 = arith.constant 0.200333506 : f32
    %77 = vector.broadcast %cst_21 : f32 to vector<56x1024xf32>
    %78 = arith.mulf %77, %76 : vector<56x1024xf32>
    %cst_22 = arith.constant 0.000000e+00 : f32
    %79 = vector.shape_cast %22 : vector<56x1xi1> to vector<56x1xi1>
    %80 = vector.broadcast %79 : vector<56x1xi1> to vector<56x1024xi1>
    %81 = vector.broadcast %cst_22 : f32 to vector<56x1024xf32>
    %82 = arith.select %80, %78, %81 : vector<56x1024xi1>, vector<56x1024xf32>
    %83 = arith.truncf %82 : vector<56x1024xf32> to vector<56x1024xbf16>
    %c0_23 = arith.constant 0 : index
    %c0_24 = arith.constant 0 : index
    %84 = vector.load %arg5[%c0_23, %c0_24] : memref<56x56xf32, #tpu.memory_space<vmem>>, vector<56x56xf32>
    %cst_25 = arith.constant dense<0.000000e+00> : vector<56x56xf32>
    %85 = tpu.matmul %56, %83, %cst_25 {dimension_numbers = #tpu.dot_dimension_numbers<[1], [1], [0], [0], [0, 0, 1, 0], [], []>} : vector<56x1024xbf16>, vector<56x1024xbf16>, vector<56x56xf32> -> vector<56x56xf32>
    %86 = arith.addf %84, %85 : vector<56x56xf32>
    %c0_26 = arith.constant 0 : index
    %c0_27 = arith.constant 0 : index
    %87 = vector.load %arg5[%c0_26, %c0_27] : memref<56x56xf32, #tpu.memory_space<vmem>>, vector<56x56xf32>
    tpu.vector_store %arg5[%c0_26, %c0_27], %86 {strides = array<i32>} : memref<56x56xf32, #tpu.memory_space<vmem>>, vector<56x56xf32>,
    %c0_i32_28 = arith.constant 0 : i32
    %88 = arith.cmpi eq, %arg1, %c0_i32_28 : i32
    %89 = arith.extui %88 : i1 to i32
    %c0_i32_29 = arith.constant 0 : i32
    %90 = arith.cmpi ne, %89, %c0_i32_29 : i32
    scf.if %90 {
      %c0_30 = arith.constant 0 : index
      %c0_31 = arith.constant 0 : index
      %91 = vector.load %arg5[%c0_30, %c0_31] : memref<56x56xf32, #tpu.memory_space<vmem>>, vector<56x56xf32>
      %92 = vector.shape_cast %91 : vector<56x56xf32> to vector<1x56x56xf32>
      %c0_32 = arith.constant 0 : index
      %c0_33 = arith.constant 0 : index
      %c0_34 = arith.constant 0 : index
      %93 = vector.load %arg4[%c0_32, %c0_33, %c0_34] : memref<1x56x56xf32, #tpu.memory_space<vmem>>, vector<1x56x56xf32>
      tpu.vector_store %arg4[%c0_32, %c0_33, %c0_34], %92 {strides = array<i32>} : memref<1x56x56xf32, #tpu.memory_space<vmem>>, vector<1x56x56xf32>,
    } else {
    }
    return
  }
  func.func @transform_0(%arg0: i32, %arg1: i32) -> (i32, i32, i32) {
    %c0_i32 = arith.constant 0 : i32
    %c0_i32_0 = arith.constant 0 : i32
    return %arg0, %c0_i32, %arg1 : i32, i32, i32
  }
  func.func @transform_1(%arg0: i32, %arg1: i32) -> (i32, i32, i32) {
    %c0_i32 = arith.constant 0 : i32
    %c0_i32_0 = arith.constant 0 : i32
    return %arg0, %c0_i32, %arg1 : i32, i32, i32
  }
  func.func @transform_2(%arg0: i32, %arg1: i32) -> (i32, i32, i32) {
    %c0_i32 = arith.constant 0 : i32
    %c0_i32_0 = arith.constant 0 : i32
    %c0_i32_1 = arith.constant 0 : i32
    return %arg0, %c0_i32, %c0_i32_0 : i32, i32, i32
  }
}

</mosaic_0001>

<llo_original>
// kernel: tpu_custom_call.1
$region0: #{tpu_custom_call.1}
  #allocation0 [shape = 'u32[]', space=smem, size = 0x4, offset = 0x4, fixed_abs, tag = 'smem constant byte address 0x4 - core index']
  #allocation1 [shape = 'u32[144,128]{1,0:T(1,128)}', space=vmem, size = 0x12000, scoped, tag = 'internal scratch']
  #allocation2 [shape = 'f32[56,56]{1,0:T(8,128)}', space=vmem, size = 0x7000, scoped, tag = 'scratch operand']
  %s0 = inlined_call_operand.hbm [shape: f32[2,1,1024], index: 0, kind: input, shape index: {}]
  %s1 = inlined_call_operand.hbm [shape: f32[2,1,1024], index: 1, kind: input, shape index: {}]
  %s2 = inlined_call_operand.hbm [shape: f32[2,56,56], index: 2, kind: output, shape index: {}]
  %s3 = sld [smem:[#allocation0]]
  $region57: #{tpu_custom_call.1} parent=0
    _
  %s5 = ssub.s32 1, %s3
  %s6 = scalar_select 0, %s5, %s3
  $region1: #{tpu_custom_call.1} parent=0
    #allocation3 [shape = 'u8[8192]{0}', space=vmem, size = 0x2000, scoped, tag = 'input window, operand 0']
    #allocation4 [shape = 's32[2]{0}', space=sflag, size = 0x8, scoped, tag = 'scoped memory for tpu_custom_call.1']
    #allocation5 [shape = 's32[2]{0}', space=sflag, size = 0x8, scoped, tag = 'scoped memory for tpu_custom_call.1']
    #allocation6 [shape = 'u8[8192]{0}', space=vmem, size = 0x2000, scoped, tag = 'input window, operand 1']
    #allocation7 [shape = 's32[2]{0}', space=sflag, size = 0x8, scoped, tag = 'scoped memory for tpu_custom_call.1']
    #allocation8 [shape = 'u8[57344]{0}', space=vmem, size = 0xe000, scoped, tag = 'output window, operand 0']
    %7 = vsyncpa [#allocation4], 0
    %s8 = scalar_lea.sflag [#allocation4], 1
    %9 = vsyncpa %s8, 0
    %10 = vsyncpa [#allocation7], 0
    %s11 = scalar_lea.sflag [#allocation7], 1
    %12 = vsyncpa %s11, 0
    %13 = vsyncpa [#allocation5], 0
    %s14 = scalar_lea.sflag [#allocation5], 1
    %15 = vsyncpa %s14, 0
    loop: start=0, step=1, limit=4
    $region2: #{tpu_custom_call.1} parent=1 // loop_pre_header
      _
    $region3: #{tpu_custom_call.1} parent=1 // loop_header
      %s17 = sphi 0, %s21
      %p18 = scmp.ge.s32.totalorder %s17, 4
      %s24 = sphi 0, %s36
      %s25 = sphi 0, %s32
      %s26 = sphi 0, %s24
      %s27 = sphi 0, %s25
      %s28 = sphi 0, %s26
      %s29 = sphi 0, %s27
      %s41 = sphi 0, %s43
      %s44 = sphi 0, %s41
      %s45 = sphi 0, %s44
      %s61 = sphi 0, %s45
      %s69 = sphi 0, %s71
      %s72 = sphi 0, %s69
      %s73 = sphi 0, %s72
      %s89 = sphi 0, %s73
      %s95 = sphi 0, %s97
      %s98 = sphi 0, %s95
      %s99 = sphi 0, %s98
      %s115 = sphi 0, %s99
    $region4: #{tpu_custom_call.1} parent=1 // loop_header_branch
      %20 = sbr.rel (%p18) target = $region8
    $region5: #{tpu_custom_call.1} parent=1 // loop_body
      %s22 = ssub.s32 %s17, 1
      %s23 = ssub.s32 %s17, 2
      %s30 = sadd.s32 1, %s25
      %p31 = scmp.ge.s32.totalorder %s30, 1
      %s32 = scalar_select %p31, 0, %s30
      %s33 = sadd.s32 1, %s24
      %s34 = scalar_select %p31, %s33, %s24
      %p35 = scmp.ge.s32.totalorder %s34, 2
      %s36 = scalar_select %p35, 0, %s34
      %s37 = ssub.s32 %s24, %s36
      %s38 = ssub.s32 %s25, %s32
      %s39 = sor.u32 %s37, %s38
      %p40 = scmp.eq.s32.totalorder %s39, 0
      %s42 = sadd.s32 %s41, 1
      %s43 = scalar_select %p40, %s41, %s42
      %p46 = pneg %p40
      %p47 = scmp.eq.s32.totalorder %s17, 1
      %p48 = por %p46, %p47
      %p49 = scmp.ne.s32.totalorder %s41, %s44
      %p50 = scmp.eq.s32.totalorder %s17, 0
      %p51 = por %p49, %p50
      %p52 = scmp.ne.s32.totalorder %s41, %s44
      %p53 = scmp.eq.s32.totalorder %s22, 1
      %p54 = por %p52, %p53
      %p55 = scmp.ne.s32.totalorder %s44, %s45
      %p56 = scmp.eq.s32.totalorder %s22, 0
      %p57 = por %p55, %p56
      %p58 = scmp.ne.s32.totalorder %s44, %s45
      %p59 = scmp.eq.s32.totalorder %s23, 1
      %p60 = por %p58, %p59
      %p62 = scmp.ne.s32.totalorder %s45, %s61
      %p63 = scmp.eq.s32.totalorder %s23, 0
      %p64 = por %p62, %p63
      %s65 = ssub.s32 %s24, %s36
      %s66 = ssub.s32 %s25, %s32
      %s67 = sor.u32 %s65, %s66
      %p68 = scmp.eq.s32.totalorder %s67, 0
      %s70 = sadd.s32 %s69, 1
      %s71 = scalar_select %p68, %s69, %s70
      %p74 = pneg %p68
      %p75 = scmp.eq.s32.totalorder %s17, 1
      %p76 = por %p74, %p75
      %p77 = scmp.ne.s32.totalorder %s69, %s72
      %p78 = scmp.eq.s32.totalorder %s17, 0
      %p79 = por %p77, %p78
      %p80 = scmp.ne.s32.totalorder %s69, %s72
      %p81 = scmp.eq.s32.totalorder %s22, 1
      %p82 = por %p80, %p81
      %p83 = scmp.ne.s32.totalorder %s72, %s73
      %p84 = scmp.eq.s32.totalorder %s22, 0
      %p85 = por %p83, %p84
      %p86 = scmp.ne.s32.totalorder %s72, %s73
      %p87 = scmp.eq.s32.totalorder %s23, 1
      %p88 = por %p86, %p87
      %p90 = scmp.ne.s32.totalorder %s73, %s89
      %p91 = scmp.eq.s32.totalorder %s23, 0
      %p92 = por %p90, %p91
      %s93 = ssub.s32 %s24, %s36
      %p94 = scmp.eq.s32.totalorder %s93, 0
      %s96 = sadd.s32 %s95, 1
      %s97 = scalar_select %p94, %s95, %s96
      %p100 = pneg %p94
      %p101 = scmp.eq.s32.totalorder %s17, 1
      %p102 = por %p100, %p101
      %p103 = scmp.ne.s32.totalorder %s95, %s98
      %p104 = scmp.eq.s32.totalorder %s17, 0
      %p105 = por %p103, %p104
      %p106 = scmp.ne.s32.totalorder %s95, %s98
      %p107 = scmp.eq.s32.totalorder %s22, 1
      %p108 = por %p106, %p107
      %p109 = scmp.ne.s32.totalorder %s98, %s99
      %p110 = scmp.eq.s32.totalorder %s22, 0
      %p111 = por %p109, %p110
      %p112 = scmp.ne.s32.totalorder %s98, %s99
      %p113 = scmp.eq.s32.totalorder %s23, 1
      %p114 = por %p112, %p113
      %p116 = scmp.ne.s32.totalorder %s99, %s115
      %p117 = scmp.eq.s32.totalorder %s23, 0
      %p118 = por %p116, %p117
      %p119 = scmp.le.s32.totalorder 1, %s17
      %p120 = scmp.lt.s32.totalorder %s17, 3
      %p121 = pnand %p119, %p120
      %p122 = pneg %p121
      // Predicated region
      $region9: #{tpu_custom_call.1} parent=5 // pred_check
        _
      $region10: #{tpu_custom_call.1} parent=5 // pred_check_branch
        %124 = sbr.rel (%p121) target = $region12
      $region11: #{tpu_custom_call.1} parent=5 // pred_region
        %s125 = ssub.s32 %s17, 1
      $region12: #{tpu_custom_call.1} parent=5 // pred_fallthru
        _
      %p126 = scmp.lt.s32.totalorder %s17, 2
      // Predicated region
      $region13: #{tpu_custom_call.1} parent=5 // pred_check
        %p127 = pneg %p126
      $region14: #{tpu_custom_call.1} parent=5 // pred_check_branch
        %129 = sbr.rel (%p127) target = $region16
      $region15: #{tpu_custom_call.1} parent=5 // pred_region
        // Predicated region
        $region17: #{tpu_custom_call.1} parent=15 // pred_check
          %p130 = pneg %p51
        $region18: #{tpu_custom_call.1} parent=15 // pred_check_branch
          %132 = sbr.rel (%p130) target = $region20
        $region19: #{tpu_custom_call.1} parent=15 // pred_region
          %s133 = sand.u32 %s41, 1
          %s134 = scalar_lea.sflag [#allocation4], %s133
          %s135 = sand.u32 %s41, 1
          %s136 = smul.addr %s135, 8
          %s137 = scalar_lea.vmem [#allocation3], %s136
          %s138 = smul.u32 8, %s25
          %s140 = ssub.s32 128, 128
          %141 = vsyncadd %s134, %s140
          %s142 = smul.addr %s24, 8
          %s143 = sadd.s32 %s138, %s142
          %s144 = smul.addr %s143, 16
          %s145 = scalar_lea.hbm %s0, %s144
          %s147 = sshll.u32 %s137, 4
          %s148 = int_to_ptr.vmem [resolvable:$true] %s147
          %150 = dma.hbm_to_vmem [thread:$0]  %s145, 128, %s148, %s134
        $region20: #{tpu_custom_call.1} parent=15 // pred_fallthru
          _
        // Predicated region
        $region21: #{tpu_custom_call.1} parent=15 // pred_check
          %p151 = pneg %p79
        $region22: #{tpu_custom_call.1} parent=15 // pred_check_branch
          %153 = sbr.rel (%p151) target = $region24
        $region23: #{tpu_custom_call.1} parent=15 // pred_region
          %s154 = sand.u32 %s69, 1
          %s155 = scalar_lea.sflag [#allocation7], %s154
          %s156 = sand.u32 %s69, 1
          %s157 = smul.addr %s156, 8
          %s158 = scalar_lea.vmem [#allocation6], %s157
          %s159 = smul.u32 8, %s25
          %s161 = ssub.s32 128, 128
          %162 = vsyncadd %s155, %s161
          %s163 = smul.addr %s24, 8
          %s164 = sadd.s32 %s159, %s163
          %s165 = smul.addr %s164, 16
          %s166 = scalar_lea.hbm %s1, %s165
          %s168 = sshll.u32 %s158, 4
          %s169 = int_to_ptr.vmem [resolvable:$true] %s168
          %171 = dma.hbm_to_vmem [thread:$0]  %s166, 128, %s169, %s155
        $region24: #{tpu_custom_call.1} parent=15 // pred_fallthru
          _
      $region16: #{tpu_custom_call.1} parent=5 // pred_fallthru
        _
      %p172 = scmp.le.s32.totalorder 1, %s17
      %p173 = scmp.lt.s32.totalorder %s17, 3
      %p174 = pnand %p172, %p173
      %p175 = pneg %p174
      // Predicated region
      $region25: #{tpu_custom_call.1} parent=5 // pred_check
        _
      $region26: #{tpu_custom_call.1} parent=5 // pred_check_branch
        %177 = sbr.rel (%p174) target = $region28
      $region27: #{tpu_custom_call.1} parent=5 // pred_region
        %s178 = ssub.s32 %s17, 1
        %s179 = sand.u32 %s44, 1
        %s180 = scalar_lea.sflag [#allocation4], %s179
        %s181 = sand.u32 %s44, 1
        %s182 = smul.addr %s181, 8
        %s183 = scalar_lea.vmem [#allocation3], %s182
        // Predicated region
        $region29: #{tpu_custom_call.1} parent=27 // pred_check
          %p184 = pneg %p57
        $region30: #{tpu_custom_call.1} parent=27 // pred_check_branch
          %186 = sbr.rel (%p184) target = $region32
        $region31: #{tpu_custom_call.1} parent=27 // pred_region
          %187 = dma.done %s180, 128
        $region32: #{tpu_custom_call.1} parent=27 // pred_fallthru
          _
        %s188 = sand.u32 %s72, 1
        %s189 = scalar_lea.sflag [#allocation7], %s188
        %s190 = sand.u32 %s72, 1
        %s191 = smul.addr %s190, 8
        %s192 = scalar_lea.vmem [#allocation6], %s191
        // Predicated region
        $region33: #{tpu_custom_call.1} parent=27 // pred_check
          %p193 = pneg %p85
        $region34: #{tpu_custom_call.1} parent=27 // pred_check_branch
          %195 = sbr.rel (%p193) target = $region36
        $region35: #{tpu_custom_call.1} parent=27 // pred_region
          %196 = dma.done %s189, 128
        $region36: #{tpu_custom_call.1} parent=27 // pred_fallthru
          _
        %s197 = sand.u32 %s44, 1
        %s198 = scalar_lea.sflag [#allocation4], %s197
        %s199 = sand.u32 %s44, 1
        %s200 = smul.addr %s199, 8
        %s201 = scalar_lea.vmem [#allocation3], %s200
        %p202 = pneg %p57
        %p203 = pneg %p54
        %s204 = sand.u32 %s72, 1
        %s205 = scalar_lea.sflag [#allocation7], %s204
        %s206 = sand.u32 %s72, 1
        %s207 = smul.addr %s206, 8
        %s208 = scalar_lea.vmem [#allocation6], %s207
        %p209 = pneg %p85
        %p210 = pneg %p82
        %p211 = pneg %p111
        %p212 = pneg %p108
        %s213 = sand.u32 %s98, 1
        %s214 = scalar_lea.sflag [#allocation5], %s213
        %s215 = sand.u32 %s98, 1
        %s216 = smul.addr %s215, 56
        %s217 = scalar_lea.vmem [#allocation8], %s216
        %s218 = smul.u32 8, %s27
        %s219 = smul.u32 8, %s27
        %p221 = scmp.eq.s32.totalorder %s27, 0
        // Predicated region
        $region37: #{tpu_custom_call.1} parent=27 // pred_check
          %p222 = pneg %p221
        $region38: #{tpu_custom_call.1} parent=27 // pred_check_branch
          %224 = sbr.rel (%p222) target = $region40
        $region39: #{tpu_custom_call.1} parent=27 // pred_region
          %vm225 = vcmask 457728
          %226 = vst.msk [vmem:[#allocation2] sm:$0xff] %vm225, 0.0
          %227 = vst.msk [vmem:[#allocation2 + $0x8] sm:$0xff] %vm225, 0.0
          %228 = vst.msk [vmem:[#allocation2 + $0x10] sm:$0xff] %vm225, 0.0
          %229 = vst.msk [vmem:[#allocation2 + $0x18] sm:$0xff] %vm225, 0.0
          %230 = vst.msk [vmem:[#allocation2 + $0x20] sm:$0xff] %vm225, 0.0
          %231 = vst.msk [vmem:[#allocation2 + $0x28] sm:$0xff] %vm225, 0.0
          %232 = vst.msk [vmem:[#allocation2 + $0x30] sm:$0xff] %vm225, 0.0
        $region40: #{tpu_custom_call.1} parent=27 // pred_fallthru
          _
        %v233 = vld [vmem:[%s183] sm:$0xff]
        %v234 = vld [vmem:[%s192] sm:$0xff]
        %v235 = vlaneseq
        %v236 = vshrl.u32 %v235, 7
        %v237 = vadd.s32 %v236, 8
        %v238 = vadd.s32 %v236, 16
        %v239 = vadd.s32 %v236, 24
        %v240 = vadd.s32 %v236, 32
        %v241 = vadd.s32 %v236, 40
        %v242 = vadd.s32 %v236, 48
        %v243 = vcvt.s32.f32 %v236
        %v244 = vcvt.s32.f32 %v237
        %v245 = vcvt.s32.f32 %v238
        %v246 = vcvt.s32.f32 %v239
        %v247 = vcvt.s32.f32 %v240
        %v248 = vcvt.s32.f32 %v241
        %v249 = vcvt.s32.f32 %v242
        %v250 = vadd.f32 %v243, 0.5
        %v251 = vadd.f32 %v244, 0.5
        %v252 = vadd.f32 %v245, 0.5
        %v253 = vadd.f32 %v246, 0.5
        %v254 = vadd.f32 %v247, 0.5
        %v255 = vadd.f32 %v248, 0.5
        %v256 = vadd.f32 %v249, 0.5
        %v257 = vmul.f32 %v250, 0.02
        %v258 = vmul.f32 %v251, 0.02
        %v259 = vmul.f32 %v252, 0.02
        %v260 = vmul.f32 %v253, 0.02
        %v261 = vmul.f32 %v254, 0.02
        %v262 = vmul.f32 %v255, 0.02
        %v263 = vmul.f32 %v256, 0.02
        %v264 = vadd.f32 %v257, 0.0
        %v265 = vadd.f32 %v258, 0.0
        %v266 = vadd.f32 %v259, 0.0
        %v267 = vadd.f32 %v260, 0.0
        %v268 = vadd.f32 %v261, 0.0
        %v269 = vadd.f32 %v262, 0.0
        %v270 = vadd.f32 %v263, 0.0
        %v271 = vmul.f32 %v264, 10.0
        %v272 = vmul.f32 %v265, 10.0
        %v273 = vmul.f32 %v266, 10.0
        %v274 = vmul.f32 %v267, 10.0
        %v275 = vmul.f32 %v268, 10.0
        %v276 = vmul.f32 %v269, 10.0
        %v277 = vmul.f32 %v270, 10.0
        %v278 = vmul.f32 %v271, 1.442695
        %v279 = vpow.pop %v278
        %v280 = vmul.f32 %v272, 1.442695
        %v281 = vpow.pop %v280
        %v282 = vmul.f32 %v273, 1.442695
        %v283 = vpow.pop %v282
        %v284 = vmul.f32 %v274, 1.442695
        %v285 = vpow.pop %v284
        %v286 = vmul.f32 %v275, 1.442695
        %v287 = vpow.pop %v286
        %v288 = vmul.f32 %v276, 1.442695
        %v289 = vpow.pop %v288
        %v290 = vmul.f32 %v277, 1.442695
        %v291 = vpow.pop %v290
        %v292 = vsub.f32 0.0, %v271
        %v293 = vsub.f32 0.0, %v272
        %v294 = vsub.f32 0.0, %v273
        %v295 = vsub.f32 0.0, %v274
        %v296 = vsub.f32 0.0, %v275
        %v297 = vsub.f32 0.0, %v276
        %v298 = vsub.f32 0.0, %v277
        %v299 = vmul.f32 %v292, 1.442695
        %v300 = vpow.pop %v299
        %v301 = vmul.f32 %v293, 1.442695
        %v302 = vpow.pop %v301
        %v303 = vmul.f32 %v294, 1.442695
        %v304 = vpow.pop %v303
        %v305 = vmul.f32 %v295, 1.442695
        %v306 = vpow.pop %v305
        %v307 = vmul.f32 %v296, 1.442695
        %v308 = vpow.pop %v307
        %v309 = vmul.f32 %v297, 1.442695
        %v310 = vpow.pop %v309
        %v311 = vmul.f32 %v298, 1.442695
        %v312 = vpow.pop %v311
        %vm313 = vcmp.lt.s32.totalorder %v236, 50
        %vm314 = vcmp.lt.s32.totalorder %v237, 50
        %vm315 = vcmp.lt.s32.totalorder %v238, 50
        %vm316 = vcmp.lt.s32.totalorder %v239, 50
        %vm317 = vcmp.lt.s32.totalorder %v240, 50
        %vm318 = vcmp.lt.s32.totalorder %v241, 50
        %vm319 = vcmp.lt.s32.totalorder %v242, 50
        %v320 = vlaneseq
        %v321 = vand.u32 %v320, 127
        %v322 = vadd.s32 %v321, 128
        %v323 = vadd.s32 %v321, 256
        %v324 = vadd.s32 %v321, 384
        %v325 = vadd.s32 %v321, 512
        %v326 = vadd.s32 %v321, 640
        %v327 = vadd.s32 %v321, 768
        %v328 = vadd.s32 %v321, 896
        %s329 = smul.u32 %s27, 1024
        %v330 = vstv %s329
        %v331 = vadd.s32 %v321, %v330
        %v332 = vadd.s32 %v322, %v330
        %v333 = vadd.s32 %v323, %v330
        %v334 = vadd.s32 %v324, %v330
        %v335 = vadd.s32 %v325, %v330
        %v336 = vadd.s32 %v326, %v330
        %v337 = vadd.s32 %v327, %v330
        %v338 = vadd.s32 %v328, %v330
        %vm339 = vcmp.lt.s32.totalorder %v331, 1024
        %vm340 = vcmp.lt.s32.totalorder %v332, 1024
        %vm341 = vcmp.lt.s32.totalorder %v333, 1024
        %vm342 = vcmp.lt.s32.totalorder %v334, 1024
        %vm343 = vcmp.lt.s32.totalorder %v335, 1024
        %vm344 = vcmp.lt.s32.totalorder %v336, 1024
        %vm345 = vcmp.lt.s32.totalorder %v337, 1024
        %vm346 = vcmp.lt.s32.totalorder %v338, 1024
        %v347 = vsel %vm313, 1, 0
        %v348 = vsel %vm314, 1, 0
        %v349 = vsel %vm315, 1, 0
        %v350 = vsel %vm316, 1, 0
        %v351 = vsel %vm317, 1, 0
        %v352 = vsel %vm318, 1, 0
        %v353 = vsel %vm319, 1, 0
        %vm354 = vcmp.eq.s32.totalorder %v347, 1
        %vm355 = vcmp.eq.s32.totalorder %v348, 1
        %vm356 = vcmp.eq.s32.totalorder %v349, 1
        %vm357 = vcmp.eq.s32.totalorder %v350, 1
        %vm358 = vcmp.eq.s32.totalorder %v351, 1
        %vm359 = vcmp.eq.s32.totalorder %v352, 1
        %vm360 = vcmp.eq.s32.totalorder %v353, 1
        %v361 = vsel %vm339, 1, 0
        %v362 = vsel %vm340, 1, 0
        %v363 = vsel %vm341, 1, 0
        %v364 = vsel %vm342, 1, 0
        %v365 = vsel %vm343, 1, 0
        %v366 = vsel %vm344, 1, 0
        %v367 = vsel %vm345, 1, 0
        %v368 = vsel %vm346, 1, 0
        %vm369 = vcmp.eq.s32.totalorder %v361, 1
        %vm370 = vcmp.eq.s32.totalorder %v362, 1
        %vm371 = vcmp.eq.s32.totalorder %v363, 1
        %vm372 = vcmp.eq.s32.totalorder %v364, 1
        %vm373 = vcmp.eq.s32.totalorder %v365, 1
        %vm374 = vcmp.eq.s32.totalorder %v366, 1
        %vm375 = vcmp.eq.s32.totalorder %v367, 1
        %vm376 = vcmp.eq.s32.totalorder %v368, 1
        %vm377 = vmand %vm354, %vm369
        %vm378 = vmand %vm354, %vm370
        %vm379 = vmand %vm354, %vm371
        %vm380 = vmand %vm354, %vm372
        %vm381 = vmand %vm354, %vm373
        %vm382 = vmand %vm354, %vm374
        %vm383 = vmand %vm354, %vm375
        %vm384 = vmand %vm354, %vm376
        %vm385 = vmand %vm355, %vm369
        %vm386 = vmand %vm355, %vm370
        %vm387 = vmand %vm355, %vm371
        %vm388 = vmand %vm355, %vm372
        %vm389 = vmand %vm355, %vm373
        %vm390 = vmand %vm355, %vm374
        %vm391 = vmand %vm355, %vm375
        %vm392 = vmand %vm355, %vm376
        %vm393 = vmand %vm356, %vm369
        %vm394 = vmand %vm356, %vm370
        %vm395 = vmand %vm356, %vm371
        %vm396 = vmand %vm356, %vm372
        %vm397 = vmand %vm356, %vm373
        %vm398 = vmand %vm356, %vm374
        %vm399 = vmand %vm356, %vm375
        %vm400 = vmand %vm356, %vm376
        %vm401 = vmand %vm357, %vm369
        %vm402 = vmand %vm357, %vm370
        %vm403 = vmand %vm357, %vm371
        %vm404 = vmand %vm357, %vm372
        %vm405 = vmand %vm357, %vm373
        %vm406 = vmand %vm357, %vm374
        %vm407 = vmand %vm357, %vm375
        %vm408 = vmand %vm357, %vm376
        %vm409 = vmand %vm358, %vm369
        %vm410 = vmand %vm358, %vm370
        %vm411 = vmand %vm358, %vm371
        %vm412 = vmand %vm358, %vm372
        %vm413 = vmand %vm358, %vm373
        %vm414 = vmand %vm358, %vm374
        %vm415 = vmand %vm358, %vm375
        %vm416 = vmand %vm358, %vm376
        %vm417 = vmand %vm359, %vm369
        %vm418 = vmand %vm359, %vm370
        %vm419 = vmand %vm359, %vm371
        %vm420 = vmand %vm359, %vm372
        %vm421 = vmand %vm359, %vm373
        %vm422 = vmand %vm359, %vm374
        %vm423 = vmand %vm359, %vm375
        %vm424 = vmand %vm359, %vm376
        %vm425 = vmand %vm360, %vm369
        %vm426 = vmand %vm360, %vm370
        %vm427 = vmand %vm360, %vm371
        %vm428 = vmand %vm360, %vm372
        %vm429 = vmand %vm360, %vm373
        %vm430 = vmand %vm360, %vm374
        %vm431 = vmand %vm360, %vm375
        %vm432 = vmand %vm360, %vm376
        %v433 = vmul.f32 %v233, -10.0
        %v434 = vmul.f32 %v433, 1.442695
        %v435 = vpow.pop %v434
        %v436 = vmul.f32 %v233, 10.0
        %v437 = vmul.f32 %v436, 1.442695
        %v438 = vpow.pop %v437
        %v440 = vlaneseq
        %v441 = vshrl.u32 %v440, 7
        %v442 = vsub.s32 0, %v441
        %v443 = vrot.slane %v435, %v442
        %v444 = vlaneseq
        %v445 = vshrl.u32 %v444, 7
        %v446 = vsub.s32 1, %v445
        %v447 = vrot.slane %v435, %v446
        %v448 = vlaneseq
        %v449 = vshrl.u32 %v448, 7
        %v450 = vsub.s32 2, %v449
        %v451 = vrot.slane %v435, %v450
        %v452 = vlaneseq
        %v453 = vshrl.u32 %v452, 7
        %v454 = vsub.s32 3, %v453
        %v455 = vrot.slane %v435, %v454
        %v456 = vlaneseq
        %v457 = vshrl.u32 %v456, 7
        %v458 = vsub.s32 4, %v457
        %v459 = vrot.slane %v435, %v458
        %v460 = vlaneseq
        %v461 = vshrl.u32 %v460, 7
        %v462 = vsub.s32 5, %v461
        %v463 = vrot.slane %v435, %v462
        %v464 = vlaneseq
        %v465 = vshrl.u32 %v464, 7
        %v466 = vsub.s32 6, %v465
        %v467 = vrot.slane %v435, %v466
        %v468 = vlaneseq
        %v469 = vshrl.u32 %v468, 7
        %v470 = vsub.s32 7, %v469
        %v471 = vrot.slane %v435, %v470
        %v480 = vmul.f32 %v279, %v443
        %v481 = vmul.f32 %v279, %v447
        %v482 = vmul.f32 %v279, %v451
        %v483 = vmul.f32 %v279, %v455
        %v484 = vmul.f32 %v279, %v459
        %v485 = vmul.f32 %v279, %v463
        %v486 = vmul.f32 %v279, %v467
        %v487 = vmul.f32 %v279, %v471
        %v488 = vmul.f32 %v281, %v443
        %v489 = vmul.f32 %v281, %v447
        %v490 = vmul.f32 %v281, %v451
        %v491 = vmul.f32 %v281, %v455
        %v492 = vmul.f32 %v281, %v459
        %v493 = vmul.f32 %v281, %v463
        %v494 = vmul.f32 %v281, %v467
        %v495 = vmul.f32 %v281, %v471
        %v496 = vmul.f32 %v283, %v443
        %v497 = vmul.f32 %v283, %v447
        %v498 = vmul.f32 %v283, %v451
        %v499 = vmul.f32 %v283, %v455
        %v500 = vmul.f32 %v283, %v459
        %v501 = vmul.f32 %v283, %v463
        %v502 = vmul.f32 %v283, %v467
        %v503 = vmul.f32 %v283, %v471
        %v504 = vmul.f32 %v285, %v443
        %v505 = vmul.f32 %v285, %v447
        %v506 = vmul.f32 %v285, %v451
        %v507 = vmul.f32 %v285, %v455
        %v508 = vmul.f32 %v285, %v459
        %v509 = vmul.f32 %v285, %v463
        %v510 = vmul.f32 %v285, %v467
        %v511 = vmul.f32 %v285, %v471
        %v512 = vmul.f32 %v287, %v443
        %v513 = vmul.f32 %v287, %v447
        %v514 = vmul.f32 %v287, %v451
        %v515 = vmul.f32 %v287, %v455
        %v516 = vmul.f32 %v287, %v459
        %v517 = vmul.f32 %v287, %v463
        %v518 = vmul.f32 %v287, %v467
        %v519 = vmul.f32 %v287, %v471
        %v520 = vmul.f32 %v289, %v443
        %v521 = vmul.f32 %v289, %v447
        %v522 = vmul.f32 %v289, %v451
        %v523 = vmul.f32 %v289, %v455
        %v524 = vmul.f32 %v289, %v459
        %v525 = vmul.f32 %v289, %v463
        %v526 = vmul.f32 %v289, %v467
        %v527 = vmul.f32 %v289, %v471
        %v528 = vmul.f32 %v291, %v443
        %v529 = vmul.f32 %v291, %v447
        %v530 = vmul.f32 %v291, %v451
        %v531 = vmul.f32 %v291, %v455
        %v532 = vmul.f32 %v291, %v459
        %v533 = vmul.f32 %v291, %v463
        %v534 = vmul.f32 %v291, %v467
        %v535 = vmul.f32 %v291, %v471
        %v537 = vlaneseq
        %v538 = vshrl.u32 %v537, 7
        %v539 = vsub.s32 0, %v538
        %v540 = vrot.slane %v438, %v539
        %v541 = vlaneseq
        %v542 = vshrl.u32 %v541, 7
        %v543 = vsub.s32 1, %v542
        %v544 = vrot.slane %v438, %v543
        %v545 = vlaneseq
        %v546 = vshrl.u32 %v545, 7
        %v547 = vsub.s32 2, %v546
        %v548 = vrot.slane %v438, %v547
        %v549 = vlaneseq
        %v550 = vshrl.u32 %v549, 7
        %v551 = vsub.s32 3, %v550
        %v552 = vrot.slane %v438, %v551
        %v553 = vlaneseq
        %v554 = vshrl.u32 %v553, 7
        %v555 = vsub.s32 4, %v554
        %v556 = vrot.slane %v438, %v555
        %v557 = vlaneseq
        %v558 = vshrl.u32 %v557, 7
        %v559 = vsub.s32 5, %v558
        %v560 = vrot.slane %v438, %v559
        %v561 = vlaneseq
        %v562 = vshrl.u32 %v561, 7
        %v563 = vsub.s32 6, %v562
        %v564 = vrot.slane %v438, %v563
        %v565 = vlaneseq
        %v566 = vshrl.u32 %v565, 7
        %v567 = vsub.s32 7, %v566
        %v568 = vrot.slane %v438, %v567
        %v577 = vmul.f32 %v300, %v540
        %v578 = vmul.f32 %v300, %v544
        %v579 = vmul.f32 %v300, %v548
        %v580 = vmul.f32 %v300, %v552
        %v581 = vmul.f32 %v300, %v556
        %v582 = vmul.f32 %v300, %v560
        %v583 = vmul.f32 %v300, %v564
        %v584 = vmul.f32 %v300, %v568
        %v585 = vmul.f32 %v302, %v540
        %v586 = vmul.f32 %v302, %v544
        %v587 = vmul.f32 %v302, %v548
        %v588 = vmul.f32 %v302, %v552
        %v589 = vmul.f32 %v302, %v556
        %v590 = vmul.f32 %v302, %v560
        %v591 = vmul.f32 %v302, %v564
        %v592 = vmul.f32 %v302, %v568
        %v593 = vmul.f32 %v304, %v540
        %v594 = vmul.f32 %v304, %v544
        %v595 = vmul.f32 %v304, %v548
        %v596 = vmul.f32 %v304, %v552
        %v597 = vmul.f32 %v304, %v556
        %v598 = vmul.f32 %v304, %v560
        %v599 = vmul.f32 %v304, %v564
        %v600 = vmul.f32 %v304, %v568
        %v601 = vmul.f32 %v306, %v540
        %v602 = vmul.f32 %v306, %v544
        %v603 = vmul.f32 %v306, %v548
        %v604 = vmul.f32 %v306, %v552
        %v605 = vmul.f32 %v306, %v556
        %v606 = vmul.f32 %v306, %v560
        %v607 = vmul.f32 %v306, %v564
        %v608 = vmul.f32 %v306, %v568
        %v609 = vmul.f32 %v308, %v540
        %v610 = vmul.f32 %v308, %v544
        %v611 = vmul.f32 %v308, %v548
        %v612 = vmul.f32 %v308, %v552
        %v613 = vmul.f32 %v308, %v556
        %v614 = vmul.f32 %v308, %v560
        %v615 = vmul.f32 %v308, %v564
        %v616 = vmul.f32 %v308, %v568
        %v617 = vmul.f32 %v310, %v540
        %v618 = vmul.f32 %v310, %v544
        %v619 = vmul.f32 %v310, %v548
        %v620 = vmul.f32 %v310, %v552
        %v621 = vmul.f32 %v310, %v556
        %v622 = vmul.f32 %v310, %v560
        %v623 = vmul.f32 %v310, %v564
        %v624 = vmul.f32 %v310, %v568
        %v625 = vmul.f32 %v312, %v540
        %v626 = vmul.f32 %v312, %v544
        %v627 = vmul.f32 %v312, %v548
        %v628 = vmul.f32 %v312, %v552
        %v629 = vmul.f32 %v312, %v556
        %v630 = vmul.f32 %v312, %v560
        %v631 = vmul.f32 %v312, %v564
        %v632 = vmul.f32 %v312, %v568
        %v633 = vadd.f32 %v480, %v577
        %v634 = vadd.f32 %v481, %v578
        %v635 = vadd.f32 %v482, %v579
        %v636 = vadd.f32 %v483, %v580
        %v637 = vadd.f32 %v484, %v581
        %v638 = vadd.f32 %v485, %v582
        %v639 = vadd.f32 %v486, %v583
        %v640 = vadd.f32 %v487, %v584
        %v641 = vadd.f32 %v488, %v585
        %v642 = vadd.f32 %v489, %v586
        %v643 = vadd.f32 %v490, %v587
        %v644 = vadd.f32 %v491, %v588
        %v645 = vadd.f32 %v492, %v589
        %v646 = vadd.f32 %v493, %v590
        %v647 = vadd.f32 %v494, %v591
        %v648 = vadd.f32 %v495, %v592
        %v649 = vadd.f32 %v496, %v593
        %v650 = vadd.f32 %v497, %v594
        %v651 = vadd.f32 %v498, %v595
        %v652 = vadd.f32 %v499, %v596
        %v653 = vadd.f32 %v500, %v597
        %v654 = vadd.f32 %v501, %v598
        %v655 = vadd.f32 %v502, %v599
        %v656 = vadd.f32 %v503, %v600
        %v657 = vadd.f32 %v504, %v601
        %v658 = vadd.f32 %v505, %v602
        %v659 = vadd.f32 %v506, %v603
        %v660 = vadd.f32 %v507, %v604
        %v661 = vadd.f32 %v508, %v605
        %v662 = vadd.f32 %v509, %v606
        %v663 = vadd.f32 %v510, %v607
        %v664 = vadd.f32 %v511, %v608
        %v665 = vadd.f32 %v512, %v609
        %v666 = vadd.f32 %v513, %v610
        %v667 = vadd.f32 %v514, %v611
        %v668 = vadd.f32 %v515, %v612
        %v669 = vadd.f32 %v516, %v613
        %v670 = vadd.f32 %v517, %v614
        %v671 = vadd.f32 %v518, %v615
        %v672 = vadd.f32 %v519, %v616
        %v673 = vadd.f32 %v520, %v617
        %v674 = vadd.f32 %v521, %v618
        %v675 = vadd.f32 %v522, %v619
        %v676 = vadd.f32 %v523, %v620
        %v677 = vadd.f32 %v524, %v621
        %v678 = vadd.f32 %v525, %v622
        %v679 = vadd.f32 %v526, %v623
        %v680 = vadd.f32 %v527, %v624
        %v681 = vadd.f32 %v528, %v625
        %v682 = vadd.f32 %v529, %v626
        %v683 = vadd.f32 %v530, %v627
        %v684 = vadd.f32 %v531, %v628
        %v685 = vadd.f32 %v532, %v629
        %v686 = vadd.f32 %v533, %v630
        %v687 = vadd.f32 %v534, %v631
        %v688 = vadd.f32 %v535, %v632
        %v689 = vadd.f32 %v633, 2.0100083
        %v690 = vadd.f32 %v634, 2.0100083
        %v691 = vadd.f32 %v635, 2.0100083
        %v692 = vadd.f32 %v636, 2.0100083
        %v693 = vadd.f32 %v637, 2.0100083
        %v694 = vadd.f32 %v638, 2.0100083
        %v695 = vadd.f32 %v639, 2.0100083
        %v696 = vadd.f32 %v640, 2.0100083
        %v697 = vadd.f32 %v641, 2.0100083
        %v698 = vadd.f32 %v642, 2.0100083
        %v699 = vadd.f32 %v643, 2.0100083
        %v700 = vadd.f32 %v644, 2.0100083
        %v701 = vadd.f32 %v645, 2.0100083
        %v702 = vadd.f32 %v646, 2.0100083
        %v703 = vadd.f32 %v647, 2.0100083
        %v704 = vadd.f32 %v648, 2.0100083
        %v705 = vadd.f32 %v649, 2.0100083
        %v706 = vadd.f32 %v650, 2.0100083
        %v707 = vadd.f32 %v651, 2.0100083
        %v708 = vadd.f32 %v652, 2.0100083
        %v709 = vadd.f32 %v653, 2.0100083
        %v710 = vadd.f32 %v654, 2.0100083
        %v711 = vadd.f32 %v655, 2.0100083
        %v712 = vadd.f32 %v656, 2.0100083
        %v713 = vadd.f32 %v657, 2.0100083
        %v714 = vadd.f32 %v658, 2.0100083
        %v715 = vadd.f32 %v659, 2.0100083
        %v716 = vadd.f32 %v660, 2.0100083
        %v717 = vadd.f32 %v661, 2.0100083
        %v718 = vadd.f32 %v662, 2.0100083
        %v719 = vadd.f32 %v663, 2.0100083
        %v720 = vadd.f32 %v664, 2.0100083
        %v721 = vadd.f32 %v665, 2.0100083
        %v722 = vadd.f32 %v666, 2.0100083
        %v723 = vadd.f32 %v667, 2.0100083
        %v724 = vadd.f32 %v668, 2.0100083
        %v725 = vadd.f32 %v669, 2.0100083
        %v726 = vadd.f32 %v670, 2.0100083
        %v727 = vadd.f32 %v671, 2.0100083
        %v728 = vadd.f32 %v672, 2.0100083
        %v729 = vadd.f32 %v673, 2.0100083
        %v730 = vadd.f32 %v674, 2.0100083
        %v731 = vadd.f32 %v675, 2.0100083
        %v732 = vadd.f32 %v676, 2.0100083
        %v733 = vadd.f32 %v677, 2.0100083
        %v734 = vadd.f32 %v678, 2.0100083
        %v735 = vadd.f32 %v679, 2.0100083
        %v736 = vadd.f32 %v680, 2.0100083
        %v737 = vadd.f32 %v681, 2.0100083
        %v738 = vadd.f32 %v682, 2.0100083
        %v739 = vadd.f32 %v683, 2.0100083
        %v740 = vadd.f32 %v684, 2.0100083
        %v741 = vadd.f32 %v685, 2.0100083
        %v742 = vadd.f32 %v686, 2.0100083
        %v743 = vadd.f32 %v687, 2.0100083
        %v744 = vadd.f32 %v688, 2.0100083
        %v745 = vrcp.pop %v689
        %v746 = vrcp.pop %v690
        %v747 = vrcp.pop %v691
        %v748 = vrcp.pop %v692
        %v749 = vrcp.pop %v693
        %v750 = vrcp.pop %v694
        %v751 = vrcp.pop %v695
        %v752 = vrcp.pop %v696
        %v753 = vrcp.pop %v697
        %v754 = vrcp.pop %v698
        %v755 = vrcp.pop %v699
        %v756 = vrcp.pop %v700
        %v757 = vrcp.pop %v701
        %v758 = vrcp.pop %v702
        %v759 = vrcp.pop %v703
        %v760 = vrcp.pop %v704
        %v761 = vrcp.pop %v705
        %v762 = vrcp.pop %v706
        %v763 = vrcp.pop %v707
        %v764 = vrcp.pop %v708
        %v765 = vrcp.pop %v709
        %v766 = vrcp.pop %v710
        %v767 = vrcp.pop %v711
        %v768 = vrcp.pop %v712
        %v769 = vrcp.pop %v713
        %v770 = vrcp.pop %v714
        %v771 = vrcp.pop %v715
        %v772 = vrcp.pop %v716
        %v773 = vrcp.pop %v717
        %v774 = vrcp.pop %v718
        %v775 = vrcp.pop %v719
        %v776 = vrcp.pop %v720
        %v777 = vrcp.pop %v721
        %v778 = vrcp.pop %v722
        %v779 = vrcp.pop %v723
        %v780 = vrcp.pop %v724
        %v781 = vrcp.pop %v725
        %v782 = vrcp.pop %v726
        %v783 = vrcp.pop %v727
        %v784 = vrcp.pop %v728
        %v785 = vrcp.pop %v729
        %v786 = vrcp.pop %v730
        %v787 = vrcp.pop %v731
        %v788 = vrcp.pop %v732
        %v789 = vrcp.pop %v733
        %v790 = vrcp.pop %v734
        %v791 = vrcp.pop %v735
        %v792 = vrcp.pop %v736
        %v793 = vrcp.pop %v737
        %v794 = vrcp.pop %v738
        %v795 = vrcp.pop %v739
        %v796 = vrcp.pop %v740
        %v797 = vrcp.pop %v741
        %v798 = vrcp.pop %v742
        %v799 = vrcp.pop %v743
        %v800 = vrcp.pop %v744
        %v801 = vmul.f32 %v689, %v745
        %v802 = vmul.f32 %v690, %v746
        %v803 = vmul.f32 %v691, %v747
        %v804 = vmul.f32 %v692, %v748
        %v805 = vmul.f32 %v693, %v749
        %v806 = vmul.f32 %v694, %v750
        %v807 = vmul.f32 %v695, %v751
        %v808 = vmul.f32 %v696, %v752
        %v809 = vmul.f32 %v697, %v753
        %v810 = vmul.f32 %v698, %v754
        %v811 = vmul.f32 %v699, %v755
        %v812 = vmul.f32 %v700, %v756
        %v813 = vmul.f32 %v701, %v757
        %v814 = vmul.f32 %v702, %v758
        %v815 = vmul.f32 %v703, %v759
        %v816 = vmul.f32 %v704, %v760
        %v817 = vmul.f32 %v705, %v761
        %v818 = vmul.f32 %v706, %v762
        %v819 = vmul.f32 %v707, %v763
        %v820 = vmul.f32 %v708, %v764
        %v821 = vmul.f32 %v709, %v765
        %v822 = vmul.f32 %v710, %v766
        %v823 = vmul.f32 %v711, %v767
        %v824 = vmul.f32 %v712, %v768
        %v825 = vmul.f32 %v713, %v769
        %v826 = vmul.f32 %v714, %v770
        %v827 = vmul.f32 %v715, %v771
        %v828 = vmul.f32 %v716, %v772
        %v829 = vmul.f32 %v717, %v773
        %v830 = vmul.f32 %v718, %v774
        %v831 = vmul.f32 %v719, %v775
        %v832 = vmul.f32 %v720, %v776
        %v833 = vmul.f32 %v721, %v777
        %v834 = vmul.f32 %v722, %v778
        %v835 = vmul.f32 %v723, %v779
        %v836 = vmul.f32 %v724, %v780
        %v837 = vmul.f32 %v725, %v781
        %v838 = vmul.f32 %v726, %v782
        %v839 = vmul.f32 %v727, %v783
        %v840 = vmul.f32 %v728, %v784
        %v841 = vmul.f32 %v729, %v785
        %v842 = vmul.f32 %v730, %v786
        %v843 = vmul.f32 %v731, %v787
        %v844 = vmul.f32 %v732, %v788
        %v845 = vmul.f32 %v733, %v789
        %v846 = vmul.f32 %v734, %v790
        %v847 = vmul.f32 %v735, %v791
        %v848 = vmul.f32 %v736, %v792
        %v849 = vmul.f32 %v737, %v793
        %v850 = vmul.f32 %v738, %v794
        %v851 = vmul.f32 %v739, %v795
        %v852 = vmul.f32 %v740, %v796
        %v853 = vmul.f32 %v741, %v797
        %v854 = vmul.f32 %v742, %v798
        %v855 = vmul.f32 %v743, %v799
        %v856 = vmul.f32 %v744, %v800
        %v857 = vsub.f32 2.0, %v801
        %v858 = vsub.f32 2.0, %v802
        %v859 = vsub.f32 2.0, %v803
        %v860 = vsub.f32 2.0, %v804
        %v861 = vsub.f32 2.0, %v805
        %v862 = vsub.f32 2.0, %v806
        %v863 = vsub.f32 2.0, %v807
        %v864 = vsub.f32 2.0, %v808
        %v865 = vsub.f32 2.0, %v809
        %v866 = vsub.f32 2.0, %v810
        %v867 = vsub.f32 2.0, %v811
        %v868 = vsub.f32 2.0, %v812
        %v869 = vsub.f32 2.0, %v813
        %v870 = vsub.f32 2.0, %v814
        %v871 = vsub.f32 2.0, %v815
        %v872 = vsub.f32 2.0, %v816
        %v873 = vsub.f32 2.0, %v817
        %v874 = vsub.f32 2.0, %v818
        %v875 = vsub.f32 2.0, %v819
        %v876 = vsub.f32 2.0, %v820
        %v877 = vsub.f32 2.0, %v821
        %v878 = vsub.f32 2.0, %v822
        %v879 = vsub.f32 2.0, %v823
        %v880 = vsub.f32 2.0, %v824
        %v881 = vsub.f32 2.0, %v825
        %v882 = vsub.f32 2.0, %v826
        %v883 = vsub.f32 2.0, %v827
        %v884 = vsub.f32 2.0, %v828
        %v885 = vsub.f32 2.0, %v829
        %v886 = vsub.f32 2.0, %v830
        %v887 = vsub.f32 2.0, %v831
        %v888 = vsub.f32 2.0, %v832
        %v889 = vsub.f32 2.0, %v833
        %v890 = vsub.f32 2.0, %v834
        %v891 = vsub.f32 2.0, %v835
        %v892 = vsub.f32 2.0, %v836
        %v893 = vsub.f32 2.0, %v837
        %v894 = vsub.f32 2.0, %v838
        %v895 = vsub.f32 2.0, %v839
        %v896 = vsub.f32 2.0, %v840
        %v897 = vsub.f32 2.0, %v841
        %v898 = vsub.f32 2.0, %v842
        %v899 = vsub.f32 2.0, %v843
        %v900 = vsub.f32 2.0, %v844
        %v901 = vsub.f32 2.0, %v845
        %v902 = vsub.f32 2.0, %v846
        %v903 = vsub.f32 2.0, %v847
        %v904 = vsub.f32 2.0, %v848
        %v905 = vsub.f32 2.0, %v849
        %v906 = vsub.f32 2.0, %v850
        %v907 = vsub.f32 2.0, %v851
        %v908 = vsub.f32 2.0, %v852
        %v909 = vsub.f32 2.0, %v853
        %v910 = vsub.f32 2.0, %v854
        %v911 = vsub.f32 2.0, %v855
        %v912 = vsub.f32 2.0, %v856
        %v913 = vmul.f32 %v745, %v857
        %v914 = vmul.f32 %v746, %v858
        %v915 = vmul.f32 %v747, %v859
        %v916 = vmul.f32 %v748, %v860
        %v917 = vmul.f32 %v749, %v861
        %v918 = vmul.f32 %v750, %v862
        %v919 = vmul.f32 %v751, %v863
        %v920 = vmul.f32 %v752, %v864
        %v921 = vmul.f32 %v753, %v865
        %v922 = vmul.f32 %v754, %v866
        %v923 = vmul.f32 %v755, %v867
        %v924 = vmul.f32 %v756, %v868
        %v925 = vmul.f32 %v757, %v869
        %v926 = vmul.f32 %v758, %v870
        %v927 = vmul.f32 %v759, %v871
        %v928 = vmul.f32 %v760, %v872
        %v929 = vmul.f32 %v761, %v873
        %v930 = vmul.f32 %v762, %v874
        %v931 = vmul.f32 %v763, %v875
        %v932 = vmul.f32 %v764, %v876
        %v933 = vmul.f32 %v765, %v877
        %v934 = vmul.f32 %v766, %v878
        %v935 = vmul.f32 %v767, %v879
        %v936 = vmul.f32 %v768, %v880
        %v937 = vmul.f32 %v769, %v881
        %v938 = vmul.f32 %v770, %v882
        %v939 = vmul.f32 %v771, %v883
        %v940 = vmul.f32 %v772, %v884
        %v941 = vmul.f32 %v773, %v885
        %v942 = vmul.f32 %v774, %v886
        %v943 = vmul.f32 %v775, %v887
        %v944 = vmul.f32 %v776, %v888
        %v945 = vmul.f32 %v777, %v889
        %v946 = vmul.f32 %v778, %v890
        %v947 = vmul.f32 %v779, %v891
        %v948 = vmul.f32 %v780, %v892
        %v949 = vmul.f32 %v781, %v893
        %v950 = vmul.f32 %v782, %v894
        %v951 = vmul.f32 %v783, %v895
        %v952 = vmul.f32 %v784, %v896
        %v953 = vmul.f32 %v785, %v897
        %v954 = vmul.f32 %v786, %v898
        %v955 = vmul.f32 %v787, %v899
        %v956 = vmul.f32 %v788, %v900
        %v957 = vmul.f32 %v789, %v901
        %v958 = vmul.f32 %v790, %v902
        %v959 = vmul.f32 %v791, %v903
        %v960 = vmul.f32 %v792, %v904
        %v961 = vmul.f32 %v793, %v905
        %v962 = vmul.f32 %v794, %v906
        %v963 = vmul.f32 %v795, %v907
        %v964 = vmul.f32 %v796, %v908
        %v965 = vmul.f32 %v797, %v909
        %v966 = vmul.f32 %v798, %v910
        %v967 = vmul.f32 %v799, %v911
        %v968 = vmul.f32 %v800, %v912
        %v969 = vmul.f32 %v913, 0.2003335
        %v970 = vmul.f32 %v914, 0.2003335
        %v971 = vmul.f32 %v915, 0.2003335
        %v972 = vmul.f32 %v916, 0.2003335
        %v973 = vmul.f32 %v917, 0.2003335
        %v974 = vmul.f32 %v918, 0.2003335
        %v975 = vmul.f32 %v919, 0.2003335
        %v976 = vmul.f32 %v920, 0.2003335
        %v977 = vmul.f32 %v921, 0.2003335
        %v978 = vmul.f32 %v922, 0.2003335
        %v979 = vmul.f32 %v923, 0.2003335
        %v980 = vmul.f32 %v924, 0.2003335
        %v981 = vmul.f32 %v925, 0.2003335
        %v982 = vmul.f32 %v926, 0.2003335
        %v983 = vmul.f32 %v927, 0.2003335
        %v984 = vmul.f32 %v928, 0.2003335
        %v985 = vmul.f32 %v929, 0.2003335
        %v986 = vmul.f32 %v930, 0.2003335
        %v987 = vmul.f32 %v931, 0.2003335
        %v988 = vmul.f32 %v932, 0.2003335
        %v989 = vmul.f32 %v933, 0.2003335
        %v990 = vmul.f32 %v934, 0.2003335
        %v991 = vmul.f32 %v935, 0.2003335
        %v992 = vmul.f32 %v936, 0.2003335
        %v993 = vmul.f32 %v937, 0.2003335
        %v994 = vmul.f32 %v938, 0.2003335
        %v995 = vmul.f32 %v939, 0.2003335
        %v996 = vmul.f32 %v940, 0.2003335
        %v997 = vmul.f32 %v941, 0.2003335
        %v998 = vmul.f32 %v942, 0.2003335
        %v999 = vmul.f32 %v943, 0.2003335
        %v1000 = vmul.f32 %v944, 0.2003335
        %v1001 = vmul.f32 %v945, 0.2003335
        %v1002 = vmul.f32 %v946, 0.2003335
        %v1003 = vmul.f32 %v947, 0.2003335
        %v1004 = vmul.f32 %v948, 0.2003335
        %v1005 = vmul.f32 %v949, 0.2003335
        %v1006 = vmul.f32 %v950, 0.2003335
        %v1007 = vmul.f32 %v951, 0.2003335
        %v1008 = vmul.f32 %v952, 0.2003335
        %v1009 = vmul.f32 %v953, 0.2003335
        %v1010 = vmul.f32 %v954, 0.2003335
        %v1011 = vmul.f32 %v955, 0.2003335
        %v1012 = vmul.f32 %v956, 0.2003335
        %v1013 = vmul.f32 %v957, 0.2003335
        %v1014 = vmul.f32 %v958, 0.2003335
        %v1015 = vmul.f32 %v959, 0.2003335
        %v1016 = vmul.f32 %v960, 0.2003335
        %v1017 = vmul.f32 %v961, 0.2003335
        %v1018 = vmul.f32 %v962, 0.2003335
        %v1019 = vmul.f32 %v963, 0.2003335
        %v1020 = vmul.f32 %v964, 0.2003335
        %v1021 = vmul.f32 %v965, 0.2003335
        %v1022 = vmul.f32 %v966, 0.2003335
        %v1023 = vmul.f32 %v967, 0.2003335
        %v1024 = vmul.f32 %v968, 0.2003335
        %v1025 = vsel %vm377, %v969, 0.0
        %v1026 = vsel %vm378, %v970, 0.0
        %v1027 = vsel %vm379, %v971, 0.0
        %v1028 = vsel %vm380, %v972, 0.0
        %v1029 = vsel %vm381, %v973, 0.0
        %v1030 = vsel %vm382, %v974, 0.0
        %v1031 = vsel %vm383, %v975, 0.0
        %v1032 = vsel %vm384, %v976, 0.0
        %v1033 = vsel %vm385, %v977, 0.0
        %v1034 = vsel %vm386, %v978, 0.0
        %v1035 = vsel %vm387, %v979, 0.0
        %v1036 = vsel %vm388, %v980, 0.0
        %v1037 = vsel %vm389, %v981, 0.0
        %v1038 = vsel %vm390, %v982, 0.0
        %v1039 = vsel %vm391, %v983, 0.0
        %v1040 = vsel %vm392, %v984, 0.0
        %v1041 = vsel %vm393, %v985, 0.0
        %v1042 = vsel %vm394, %v986, 0.0
        %v1043 = vsel %vm395, %v987, 0.0
        %v1044 = vsel %vm396, %v988, 0.0
        %v1045 = vsel %vm397, %v989, 0.0
        %v1046 = vsel %vm398, %v990, 0.0
        %v1047 = vsel %vm399, %v991, 0.0
        %v1048 = vsel %vm400, %v992, 0.0
        %v1049 = vsel %vm401, %v993, 0.0
        %v1050 = vsel %vm402, %v994, 0.0
        %v1051 = vsel %vm403, %v995, 0.0
        %v1052 = vsel %vm404, %v996, 0.0
        %v1053 = vsel %vm405, %v997, 0.0
        %v1054 = vsel %vm406, %v998, 0.0
        %v1055 = vsel %vm407, %v999, 0.0
        %v1056 = vsel %vm408, %v1000, 0.0
        %v1057 = vsel %vm409, %v1001, 0.0
        %v1058 = vsel %vm410, %v1002, 0.0
        %v1059 = vsel %vm411, %v1003, 0.0
        %v1060 = vsel %vm412, %v1004, 0.0
        %v1061 = vsel %vm413, %v1005, 0.0
        %v1062 = vsel %vm414, %v1006, 0.0
        %v1063 = vsel %vm415, %v1007, 0.0
        %v1064 = vsel %vm416, %v1008, 0.0
        %v1065 = vsel %vm417, %v1009, 0.0
        %v1066 = vsel %vm418, %v1010, 0.0
        %v1067 = vsel %vm419, %v1011, 0.0
        %v1068 = vsel %vm420, %v1012, 0.0
        %v1069 = vsel %vm421, %v1013, 0.0
        %v1070 = vsel %vm422, %v1014, 0.0
        %v1071 = vsel %vm423, %v1015, 0.0
        %v1072 = vsel %vm424, %v1016, 0.0
        %v1073 = vsel %vm425, %v1017, 0.0
        %v1074 = vsel %vm426, %v1018, 0.0
        %v1075 = vsel %vm427, %v1019, 0.0
        %v1076 = vsel %vm428, %v1020, 0.0
        %v1077 = vsel %vm429, %v1021, 0.0
        %v1078 = vsel %vm430, %v1022, 0.0
        %v1079 = vsel %vm431, %v1023, 0.0
        %v1080 = vsel %vm432, %v1024, 0.0
        %v1081 = vpack.c.bf16 %v1033, %v1025
        %v1082 = vpack.c.bf16 %v1034, %v1026
        %v1083 = vpack.c.bf16 %v1035, %v1027
        %v1084 = vpack.c.bf16 %v1036, %v1028
        %v1085 = vpack.c.bf16 %v1037, %v1029
        %v1086 = vpack.c.bf16 %v1038, %v1030
        %v1087 = vpack.c.bf16 %v1039, %v1031
        %v1088 = vpack.c.bf16 %v1040, %v1032
        %v1089 = vpack.c.bf16 %v1049, %v1041
        %v1090 = vpack.c.bf16 %v1050, %v1042
        %v1091 = vpack.c.bf16 %v1051, %v1043
        %v1092 = vpack.c.bf16 %v1052, %v1044
        %v1093 = vpack.c.bf16 %v1053, %v1045
        %v1094 = vpack.c.bf16 %v1054, %v1046
        %v1095 = vpack.c.bf16 %v1055, %v1047
        %v1096 = vpack.c.bf16 %v1056, %v1048
        %v1097 = vpack.c.bf16 %v1065, %v1057
        %v1098 = vpack.c.bf16 %v1066, %v1058
        %v1099 = vpack.c.bf16 %v1067, %v1059
        %v1100 = vpack.c.bf16 %v1068, %v1060
        %v1101 = vpack.c.bf16 %v1069, %v1061
        %v1102 = vpack.c.bf16 %v1070, %v1062
        %v1103 = vpack.c.bf16 %v1071, %v1063
        %v1104 = vpack.c.bf16 %v1072, %v1064
        %v1105 = vpack.c.bf16 %v1073, %v1073
        %v1106 = vpack.c.bf16 %v1074, %v1074
        %v1107 = vpack.c.bf16 %v1075, %v1075
        %v1108 = vpack.c.bf16 %v1076, %v1076
        %v1109 = vpack.c.bf16 %v1077, %v1077
        %v1110 = vpack.c.bf16 %v1078, %v1078
        %v1111 = vpack.c.bf16 %v1079, %v1079
        %v1112 = vpack.c.bf16 %v1080, %v1080
        %v1113 = vmul.f32 %v234, -10.0
        %v1114 = vmul.f32 %v1113, 1.442695
        %v1115 = vpow.pop %v1114
        %v1116 = vmul.f32 %v234, 10.0
        %v1117 = vmul.f32 %v1116, 1.442695
        %v1118 = vpow.pop %v1117
        %v1120 = vlaneseq
        %v1121 = vshrl.u32 %v1120, 7
        %v1122 = vsub.s32 0, %v1121
        %v1123 = vrot.slane %v1115, %v1122
        %v1124 = vlaneseq
        %v1125 = vshrl.u32 %v1124, 7
        %v1126 = vsub.s32 1, %v1125
        %v1127 = vrot.slane %v1115, %v1126
        %v1128 = vlaneseq
        %v1129 = vshrl.u32 %v1128, 7
        %v1130 = vsub.s32 2, %v1129
        %v1131 = vrot.slane %v1115, %v1130
        %v1132 = vlaneseq
        %v1133 = vshrl.u32 %v1132, 7
        %v1134 = vsub.s32 3, %v1133
        %v1135 = vrot.slane %v1115, %v1134
        %v1136 = vlaneseq
        %v1137 = vshrl.u32 %v1136, 7
        %v1138 = vsub.s32 4, %v1137
        %v1139 = vrot.slane %v1115, %v1138
        %v1140 = vlaneseq
        %v1141 = vshrl.u32 %v1140, 7
        %v1142 = vsub.s32 5, %v1141
        %v1143 = vrot.slane %v1115, %v1142
        %v1144 = vlaneseq
        %v1145 = vshrl.u32 %v1144, 7
        %v1146 = vsub.s32 6, %v1145
        %v1147 = vrot.slane %v1115, %v1146
        %v1148 = vlaneseq
        %v1149 = vshrl.u32 %v1148, 7
        %v1150 = vsub.s32 7, %v1149
        %v1151 = vrot.slane %v1115, %v1150
        %v1160 = vmul.f32 %v279, %v1123
        %v1161 = vmul.f32 %v279, %v1127
        %v1162 = vmul.f32 %v279, %v1131
        %v1163 = vmul.f32 %v279, %v1135
        %v1164 = vmul.f32 %v279, %v1139
        %v1165 = vmul.f32 %v279, %v1143
        %v1166 = vmul.f32 %v279, %v1147
        %v1167 = vmul.f32 %v279, %v1151
        %v1168 = vmul.f32 %v281, %v1123
        %v1169 = vmul.f32 %v281, %v1127
        %v1170 = vmul.f32 %v281, %v1131
        %v1171 = vmul.f32 %v281, %v1135
        %v1172 = vmul.f32 %v281, %v1139
        %v1173 = vmul.f32 %v281, %v1143
        %v1174 = vmul.f32 %v281, %v1147
        %v1175 = vmul.f32 %v281, %v1151
        %v1176 = vmul.f32 %v283, %v1123
        %v1177 = vmul.f32 %v283, %v1127
        %v1178 = vmul.f32 %v283, %v1131
        %v1179 = vmul.f32 %v283, %v1135
        %v1180 = vmul.f32 %v283, %v1139
        %v1181 = vmul.f32 %v283, %v1143
        %v1182 = vmul.f32 %v283, %v1147
        %v1183 = vmul.f32 %v283, %v1151
        %v1184 = vmul.f32 %v285, %v1123
        %v1185 = vmul.f32 %v285, %v1127
        %v1186 = vmul.f32 %v285, %v1131
        %v1187 = vmul.f32 %v285, %v1135
        %v1188 = vmul.f32 %v285, %v1139
        %v1189 = vmul.f32 %v285, %v1143
        %v1190 = vmul.f32 %v285, %v1147
        %v1191 = vmul.f32 %v285, %v1151
        %v1192 = vmul.f32 %v287, %v1123
        %v1193 = vmul.f32 %v287, %v1127
        %v1194 = vmul.f32 %v287, %v1131
        %v1195 = vmul.f32 %v287, %v1135
        %v1196 = vmul.f32 %v287, %v1139
        %v1197 = vmul.f32 %v287, %v1143
        %v1198 = vmul.f32 %v287, %v1147
        %v1199 = vmul.f32 %v287, %v1151
        %v1200 = vmul.f32 %v289, %v1123
        %v1201 = vmul.f32 %v289, %v1127
        %v1202 = vmul.f32 %v289, %v1131
        %v1203 = vmul.f32 %v289, %v1135
        %v1204 = vmul.f32 %v289, %v1139
        %v1205 = vmul.f32 %v289, %v1143
        %v1206 = vmul.f32 %v289, %v1147
        %v1207 = vmul.f32 %v289, %v1151
        %v1208 = vmul.f32 %v291, %v1123
        %v1209 = vmul.f32 %v291, %v1127
        %v1210 = vmul.f32 %v291, %v1131
        %v1211 = vmul.f32 %v291, %v1135
        %v1212 = vmul.f32 %v291, %v1139
        %v1213 = vmul.f32 %v291, %v1143
        %v1214 = vmul.f32 %v291, %v1147
        %v1215 = vmul.f32 %v291, %v1151
        %v1217 = vlaneseq
        %v1218 = vshrl.u32 %v1217, 7
        %v1219 = vsub.s32 0, %v1218
        %v1220 = vrot.slane %v1118, %v1219
        %v1221 = vlaneseq
        %v1222 = vshrl.u32 %v1221, 7
        %v1223 = vsub.s32 1, %v1222
        %v1224 = vrot.slane %v1118, %v1223
        %v1225 = vlaneseq
        %v1226 = vshrl.u32 %v1225, 7
        %v1227 = vsub.s32 2, %v1226
        %v1228 = vrot.slane %v1118, %v1227
        %v1229 = vlaneseq
        %v1230 = vshrl.u32 %v1229, 7
        %v1231 = vsub.s32 3, %v1230
        %v1232 = vrot.slane %v1118, %v1231
        %v1233 = vlaneseq
        %v1234 = vshrl.u32 %v1233, 7
        %v1235 = vsub.s32 4, %v1234
        %v1236 = vrot.slane %v1118, %v1235
        %v1237 = vlaneseq
        %v1238 = vshrl.u32 %v1237, 7
        %v1239 = vsub.s32 5, %v1238
        %v1240 = vrot.slane %v1118, %v1239
        %v1241 = vlaneseq
        %v1242 = vshrl.u32 %v1241, 7
        %v1243 = vsub.s32 6, %v1242
        %v1244 = vrot.slane %v1118, %v1243
        %v1245 = vlaneseq
        %v1246 = vshrl.u32 %v1245, 7
        %v1247 = vsub.s32 7, %v1246
        %v1248 = vrot.slane %v1118, %v1247
        %v1257 = vmul.f32 %v300, %v1220
        %v1258 = vmul.f32 %v300, %v1224
        %v1259 = vmul.f32 %v300, %v1228
        %v1260 = vmul.f32 %v300, %v1232
        %v1261 = vmul.f32 %v300, %v1236
        %v1262 = vmul.f32 %v300, %v1240
        %v1263 = vmul.f32 %v300, %v1244
        %v1264 = vmul.f32 %v300, %v1248
        %v1265 = vmul.f32 %v302, %v1220
        %v1266 = vmul.f32 %v302, %v1224
        %v1267 = vmul.f32 %v302, %v1228
        %v1268 = vmul.f32 %v302, %v1232
        %v1269 = vmul.f32 %v302, %v1236
        %v1270 = vmul.f32 %v302, %v1240
        %v1271 = vmul.f32 %v302, %v1244
        %v1272 = vmul.f32 %v302, %v1248
        %v1273 = vmul.f32 %v304, %v1220
        %v1274 = vmul.f32 %v304, %v1224
        %v1275 = vmul.f32 %v304, %v1228
        %v1276 = vmul.f32 %v304, %v1232
        %v1277 = vmul.f32 %v304, %v1236
        %v1278 = vmul.f32 %v304, %v1240
        %v1279 = vmul.f32 %v304, %v1244
        %v1280 = vmul.f32 %v304, %v1248
        %v1281 = vmul.f32 %v306, %v1220
        %v1282 = vmul.f32 %v306, %v1224
        %v1283 = vmul.f32 %v306, %v1228
        %v1284 = vmul.f32 %v306, %v1232
        %v1285 = vmul.f32 %v306, %v1236
        %v1286 = vmul.f32 %v306, %v1240
        %v1287 = vmul.f32 %v306, %v1244
        %v1288 = vmul.f32 %v306, %v1248
        %v1289 = vmul.f32 %v308, %v1220
        %v1290 = vmul.f32 %v308, %v1224
        %v1291 = vmul.f32 %v308, %v1228
        %v1292 = vmul.f32 %v308, %v1232
        %v1293 = vmul.f32 %v308, %v1236
        %v1294 = vmul.f32 %v308, %v1240
        %v1295 = vmul.f32 %v308, %v1244
        %v1296 = vmul.f32 %v308, %v1248
        %v1297 = vmul.f32 %v310, %v1220
        %v1298 = vmul.f32 %v310, %v1224
        %v1299 = vmul.f32 %v310, %v1228
        %v1300 = vmul.f32 %v310, %v1232
        %v1301 = vmul.f32 %v310, %v1236
        %v1302 = vmul.f32 %v310, %v1240
        %v1303 = vmul.f32 %v310, %v1244
        %v1304 = vmul.f32 %v310, %v1248
        %v1305 = vmul.f32 %v312, %v1220
        %v1306 = vmul.f32 %v312, %v1224
        %v1307 = vmul.f32 %v312, %v1228
        %v1308 = vmul.f32 %v312, %v1232
        %v1309 = vmul.f32 %v312, %v1236
        %v1310 = vmul.f32 %v312, %v1240
        %v1311 = vmul.f32 %v312, %v1244
        %v1312 = vmul.f32 %v312, %v1248
        %v1313 = vadd.f32 %v1160, %v1257
        %v1314 = vadd.f32 %v1161, %v1258
        %v1315 = vadd.f32 %v1162, %v1259
        %v1316 = vadd.f32 %v1163, %v1260
        %v1317 = vadd.f32 %v1164, %v1261
        %v1318 = vadd.f32 %v1165, %v1262
        %v1319 = vadd.f32 %v1166, %v1263
        %v1320 = vadd.f32 %v1167, %v1264
        %v1321 = vadd.f32 %v1168, %v1265
        %v1322 = vadd.f32 %v1169, %v1266
        %v1323 = vadd.f32 %v1170, %v1267
        %v1324 = vadd.f32 %v1171, %v1268
        %v1325 = vadd.f32 %v1172, %v1269
        %v1326 = vadd.f32 %v1173, %v1270
        %v1327 = vadd.f32 %v1174, %v1271
        %v1328 = vadd.f32 %v1175, %v1272
        %v1329 = vadd.f32 %v1176, %v1273
        %v1330 = vadd.f32 %v1177, %v1274
        %v1331 = vadd.f32 %v1178, %v1275
        %v1332 = vadd.f32 %v1179, %v1276
        %v1333 = vadd.f32 %v1180, %v1277
        %v1334 = vadd.f32 %v1181, %v1278
        %v1335 = vadd.f32 %v1182, %v1279
        %v1336 = vadd.f32 %v1183, %v1280
        %v1337 = vadd.f32 %v1184, %v1281
        %v1338 = vadd.f32 %v1185, %v1282
        %v1339 = vadd.f32 %v1186, %v1283
        %v1340 = vadd.f32 %v1187, %v1284
        %v1341 = vadd.f32 %v1188, %v1285
        %v1342 = vadd.f32 %v1189, %v1286
        %v1343 = vadd.f32 %v1190, %v1287
        %v1344 = vadd.f32 %v1191, %v1288
        %v1345 = vadd.f32 %v1192, %v1289
        %v1346 = vadd.f32 %v1193, %v1290
        %v1347 = vadd.f32 %v1194, %v1291
        %v1348 = vadd.f32 %v1195, %v1292
        %v1349 = vadd.f32 %v1196, %v1293
        %v1350 = vadd.f32 %v1197, %v1294
        %v1351 = vadd.f32 %v1198, %v1295
        %v1352 = vadd.f32 %v1199, %v1296
        %v1353 = vadd.f32 %v1200, %v1297
        %v1354 = vadd.f32 %v1201, %v1298
        %v1355 = vadd.f32 %v1202, %v1299
        %v1356 = vadd.f32 %v1203, %v1300
        %v1357 = vadd.f32 %v1204, %v1301
        %v1358 = vadd.f32 %v1205, %v1302
        %v1359 = vadd.f32 %v1206, %v1303
        %v1360 = vadd.f32 %v1207, %v1304
        %v1361 = vadd.f32 %v1208, %v1305
        %v1362 = vadd.f32 %v1209, %v1306
        %v1363 = vadd.f32 %v1210, %v1307
        %v1364 = vadd.f32 %v1211, %v1308
        %v1365 = vadd.f32 %v1212, %v1309
        %v1366 = vadd.f32 %v1213, %v1310
        %v1367 = vadd.f32 %v1214, %v1311
        %v1368 = vadd.f32 %v1215, %v1312
        %v1369 = vadd.f32 %v1313, 2.0100083
        %v1370 = vadd.f32 %v1314, 2.0100083
        %v1371 = vadd.f32 %v1315, 2.0100083
        %v1372 = vadd.f32 %v1316, 2.0100083
        %v1373 = vadd.f32 %v1317, 2.0100083
        %v1374 = vadd.f32 %v1318, 2.0100083
        %v1375 = vadd.f32 %v1319, 2.0100083
        %v1376 = vadd.f32 %v1320, 2.0100083
        %v1377 = vadd.f32 %v1321, 2.0100083
        %v1378 = vadd.f32 %v1322, 2.0100083
        %v1379 = vadd.f32 %v1323, 2.0100083
        %v1380 = vadd.f32 %v1324, 2.0100083
        %v1381 = vadd.f32 %v1325, 2.0100083
        %v1382 = vadd.f32 %v1326, 2.0100083
        %v1383 = vadd.f32 %v1327, 2.0100083
        %v1384 = vadd.f32 %v1328, 2.0100083
        %v1385 = vadd.f32 %v1329, 2.0100083
        %v1386 = vadd.f32 %v1330, 2.0100083
        %v1387 = vadd.f32 %v1331, 2.0100083
        %v1388 = vadd.f32 %v1332, 2.0100083
        %v1389 = vadd.f32 %v1333, 2.0100083
        %v1390 = vadd.f32 %v1334, 2.0100083
        %v1391 = vadd.f32 %v1335, 2.0100083
        %v1392 = vadd.f32 %v1336, 2.0100083
        %v1393 = vadd.f32 %v1337, 2.0100083
        %v1394 = vadd.f32 %v1338, 2.0100083
        %v1395 = vadd.f32 %v1339, 2.0100083
        %v1396 = vadd.f32 %v1340, 2.0100083
        %v1397 = vadd.f32 %v1341, 2.0100083
        %v1398 = vadd.f32 %v1342, 2.0100083
        %v1399 = vadd.f32 %v1343, 2.0100083
        %v1400 = vadd.f32 %v1344, 2.0100083
        %v1401 = vadd.f32 %v1345, 2.0100083
        %v1402 = vadd.f32 %v1346, 2.0100083
        %v1403 = vadd.f32 %v1347, 2.0100083
        %v1404 = vadd.f32 %v1348, 2.0100083
        %v1405 = vadd.f32 %v1349, 2.0100083
        %v1406 = vadd.f32 %v1350, 2.0100083
        %v1407 = vadd.f32 %v1351, 2.0100083
        %v1408 = vadd.f32 %v1352, 2.0100083
        %v1409 = vadd.f32 %v1353, 2.0100083
        %v1410 = vadd.f32 %v1354, 2.0100083
        %v1411 = vadd.f32 %v1355, 2.0100083
        %v1412 = vadd.f32 %v1356, 2.0100083
        %v1413 = vadd.f32 %v1357, 2.0100083
        %v1414 = vadd.f32 %v1358, 2.0100083
        %v1415 = vadd.f32 %v1359, 2.0100083
        %v1416 = vadd.f32 %v1360, 2.0100083
        %v1417 = vadd.f32 %v1361, 2.0100083
        %v1418 = vadd.f32 %v1362, 2.0100083
        %v1419 = vadd.f32 %v1363, 2.0100083
        %v1420 = vadd.f32 %v1364, 2.0100083
        %v1421 = vadd.f32 %v1365, 2.0100083
        %v1422 = vadd.f32 %v1366, 2.0100083
        %v1423 = vadd.f32 %v1367, 2.0100083
        %v1424 = vadd.f32 %v1368, 2.0100083
        %v1425 = vrcp.pop %v1369
        %v1426 = vrcp.pop %v1370
        %v1427 = vrcp.pop %v1371
        %v1428 = vrcp.pop %v1372
        %v1429 = vrcp.pop %v1373
        %v1430 = vrcp.pop %v1374
        %v1431 = vrcp.pop %v1375
        %v1432 = vrcp.pop %v1376
        %v1433 = vrcp.pop %v1377
        %v1434 = vrcp.pop %v1378
        %v1435 = vrcp.pop %v1379
        %v1436 = vrcp.pop %v1380
        %v1437 = vrcp.pop %v1381
        %v1438 = vrcp.pop %v1382
        %v1439 = vrcp.pop %v1383
        %v1440 = vrcp.pop %v1384
        %v1441 = vrcp.pop %v1385
        %v1442 = vrcp.pop %v1386
        %v1443 = vrcp.pop %v1387
        %v1444 = vrcp.pop %v1388
        %v1445 = vrcp.pop %v1389
        %v1446 = vrcp.pop %v1390
        %v1447 = vrcp.pop %v1391
        %v1448 = vrcp.pop %v1392
        %v1449 = vrcp.pop %v1393
        %v1450 = vrcp.pop %v1394
        %v1451 = vrcp.pop %v1395
        %v1452 = vrcp.pop %v1396
        %v1453 = vrcp.pop %v1397
        %v1454 = vrcp.pop %v1398
        %v1455 = vrcp.pop %v1399
        %v1456 = vrcp.pop %v1400
        %v1457 = vrcp.pop %v1401
        %v1458 = vrcp.pop %v1402
        %v1459 = vrcp.pop %v1403
        %v1460 = vrcp.pop %v1404
        %v1461 = vrcp.pop %v1405
        %v1462 = vrcp.pop %v1406
        %v1463 = vrcp.pop %v1407
        %v1464 = vrcp.pop %v1408
        %v1465 = vrcp.pop %v1409
        %v1466 = vrcp.pop %v1410
        %v1467 = vrcp.pop %v1411
        %v1468 = vrcp.pop %v1412
        %v1469 = vrcp.pop %v1413
        %v1470 = vrcp.pop %v1414
        %v1471 = vrcp.pop %v1415
        %v1472 = vrcp.pop %v1416
        %v1473 = vrcp.pop %v1417
        %v1474 = vrcp.pop %v1418
        %v1475 = vrcp.pop %v1419
        %v1476 = vrcp.pop %v1420
        %v1477 = vrcp.pop %v1421
        %v1478 = vrcp.pop %v1422
        %v1479 = vrcp.pop %v1423
        %v1480 = vrcp.pop %v1424
        %v1481 = vmul.f32 %v1369, %v1425
        %v1482 = vmul.f32 %v1370, %v1426
        %v1483 = vmul.f32 %v1371, %v1427
        %v1484 = vmul.f32 %v1372, %v1428
        %v1485 = vmul.f32 %v1373, %v1429
        %v1486 = vmul.f32 %v1374, %v1430
        %v1487 = vmul.f32 %v1375, %v1431
        %v1488 = vmul.f32 %v1376, %v1432
        %v1489 = vmul.f32 %v1377, %v1433
        %v1490 = vmul.f32 %v1378, %v1434
        %v1491 = vmul.f32 %v1379, %v1435
        %v1492 = vmul.f32 %v1380, %v1436
        %v1493 = vmul.f32 %v1381, %v1437
        %v1494 = vmul.f32 %v1382, %v1438
        %v1495 = vmul.f32 %v1383, %v1439
        %v1496 = vmul.f32 %v1384, %v1440
        %v1497 = vmul.f32 %v1385, %v1441
        %v1498 = vmul.f32 %v1386, %v1442
        %v1499 = vmul.f32 %v1387, %v1443
        %v1500 = vmul.f32 %v1388, %v1444
        %v1501 = vmul.f32 %v1389, %v1445
        %v1502 = vmul.f32 %v1390, %v1446
        %v1503 = vmul.f32 %v1391, %v1447
        %v1504 = vmul.f32 %v1392, %v1448
        %v1505 = vmul.f32 %v1393, %v1449
        %v1506 = vmul.f32 %v1394, %v1450
        %v1507 = vmul.f32 %v1395, %v1451
        %v1508 = vmul.f32 %v1396, %v1452
        %v1509 = vmul.f32 %v1397, %v1453
        %v1510 = vmul.f32 %v1398, %v1454
        %v1511 = vmul.f32 %v1399, %v1455
        %v1512 = vmul.f32 %v1400, %v1456
        %v1513 = vmul.f32 %v1401, %v1457
        %v1514 = vmul.f32 %v1402, %v1458
        %v1515 = vmul.f32 %v1403, %v1459
        %v1516 = vmul.f32 %v1404, %v1460
        %v1517 = vmul.f32 %v1405, %v1461
        %v1518 = vmul.f32 %v1406, %v1462
        %v1519 = vmul.f32 %v1407, %v1463
        %v1520 = vmul.f32 %v1408, %v1464
        %v1521 = vmul.f32 %v1409, %v1465
        %v1522 = vmul.f32 %v1410, %v1466
        %v1523 = vmul.f32 %v1411, %v1467
        %v1524 = vmul.f32 %v1412, %v1468
        %v1525 = vmul.f32 %v1413, %v1469
        %v1526 = vmul.f32 %v1414, %v1470
        %v1527 = vmul.f32 %v1415, %v1471
        %v1528 = vmul.f32 %v1416, %v1472
        %v1529 = vmul.f32 %v1417, %v1473
        %v1530 = vmul.f32 %v1418, %v1474
        %v1531 = vmul.f32 %v1419, %v1475
        %v1532 = vmul.f32 %v1420, %v1476
        %v1533 = vmul.f32 %v1421, %v1477
        %v1534 = vmul.f32 %v1422, %v1478
        %v1535 = vmul.f32 %v1423, %v1479
        %v1536 = vmul.f32 %v1424, %v1480
        %v1537 = vsub.f32 2.0, %v1481
        %v1538 = vsub.f32 2.0, %v1482
        %v1539 = vsub.f32 2.0, %v1483
        %v1540 = vsub.f32 2.0, %v1484
        %v1541 = vsub.f32 2.0, %v1485
        %v1542 = vsub.f32 2.0, %v1486
        %v1543 = vsub.f32 2.0, %v1487
        %v1544 = vsub.f32 2.0, %v1488
        %v1545 = vsub.f32 2.0, %v1489
        %v1546 = vsub.f32 2.0, %v1490
        %v1547 = vsub.f32 2.0, %v1491
        %v1548 = vsub.f32 2.0, %v1492
        %v1549 = vsub.f32 2.0, %v1493
        %v1550 = vsub.f32 2.0, %v1494
        %v1551 = vsub.f32 2.0, %v1495
        %v1552 = vsub.f32 2.0, %v1496
        %v1553 = vsub.f32 2.0, %v1497
        %v1554 = vsub.f32 2.0, %v1498
        %v1555 = vsub.f32 2.0, %v1499
        %v1556 = vsub.f32 2.0, %v1500
        %v1557 = vsub.f32 2.0, %v1501
        %v1558 = vsub.f32 2.0, %v1502
        %v1559 = vsub.f32 2.0, %v1503
        %v1560 = vsub.f32 2.0, %v1504
        %v1561 = vsub.f32 2.0, %v1505
        %v1562 = vsub.f32 2.0, %v1506
        %v1563 = vsub.f32 2.0, %v1507
        %v1564 = vsub.f32 2.0, %v1508
        %v1565 = vsub.f32 2.0, %v1509
        %v1566 = vsub.f32 2.0, %v1510
        %v1567 = vsub.f32 2.0, %v1511
        %v1568 = vsub.f32 2.0, %v1512
        %v1569 = vsub.f32 2.0, %v1513
        %v1570 = vsub.f32 2.0, %v1514
        %v1571 = vsub.f32 2.0, %v1515
        %v1572 = vsub.f32 2.0, %v1516
        %v1573 = vsub.f32 2.0, %v1517
        %v1574 = vsub.f32 2.0, %v1518
        %v1575 = vsub.f32 2.0, %v1519
        %v1576 = vsub.f32 2.0, %v1520
        %v1577 = vsub.f32 2.0, %v1521
        %v1578 = vsub.f32 2.0, %v1522
        %v1579 = vsub.f32 2.0, %v1523
        %v1580 = vsub.f32 2.0, %v1524
        %v1581 = vsub.f32 2.0, %v1525
        %v1582 = vsub.f32 2.0, %v1526
        %v1583 = vsub.f32 2.0, %v1527
        %v1584 = vsub.f32 2.0, %v1528
        %v1585 = vsub.f32 2.0, %v1529
        %v1586 = vsub.f32 2.0, %v1530
        %v1587 = vsub.f32 2.0, %v1531
        %v1588 = vsub.f32 2.0, %v1532
        %v1589 = vsub.f32 2.0, %v1533
        %v1590 = vsub.f32 2.0, %v1534
        %v1591 = vsub.f32 2.0, %v1535
        %v1592 = vsub.f32 2.0, %v1536
        %v1593 = vmul.f32 %v1425, %v1537
        %v1594 = vmul.f32 %v1426, %v1538
        %v1595 = vmul.f32 %v1427, %v1539
        %v1596 = vmul.f32 %v1428, %v1540
        %v1597 = vmul.f32 %v1429, %v1541
        %v1598 = vmul.f32 %v1430, %v1542
        %v1599 = vmul.f32 %v1431, %v1543
        %v1600 = vmul.f32 %v1432, %v1544
        %v1601 = vmul.f32 %v1433, %v1545
        %v1602 = vmul.f32 %v1434, %v1546
        %v1603 = vmul.f32 %v1435, %v1547
        %v1604 = vmul.f32 %v1436, %v1548
        %v1605 = vmul.f32 %v1437, %v1549
        %v1606 = vmul.f32 %v1438, %v1550
        %v1607 = vmul.f32 %v1439, %v1551
        %v1608 = vmul.f32 %v1440, %v1552
        %v1609 = vmul.f32 %v1441, %v1553
        %v1610 = vmul.f32 %v1442, %v1554
        %v1611 = vmul.f32 %v1443, %v1555
        %v1612 = vmul.f32 %v1444, %v1556
        %v1613 = vmul.f32 %v1445, %v1557
        %v1614 = vmul.f32 %v1446, %v1558
        %v1615 = vmul.f32 %v1447, %v1559
        %v1616 = vmul.f32 %v1448, %v1560
        %v1617 = vmul.f32 %v1449, %v1561
        %v1618 = vmul.f32 %v1450, %v1562
        %v1619 = vmul.f32 %v1451, %v1563
        %v1620 = vmul.f32 %v1452, %v1564
        %v1621 = vmul.f32 %v1453, %v1565
        %v1622 = vmul.f32 %v1454, %v1566
        %v1623 = vmul.f32 %v1455, %v1567
        %v1624 = vmul.f32 %v1456, %v1568
        %v1625 = vmul.f32 %v1457, %v1569
        %v1626 = vmul.f32 %v1458, %v1570
        %v1627 = vmul.f32 %v1459, %v1571
        %v1628 = vmul.f32 %v1460, %v1572
        %v1629 = vmul.f32 %v1461, %v1573
        %v1630 = vmul.f32 %v1462, %v1574
        %v1631 = vmul.f32 %v1463, %v1575
        %v1632 = vmul.f32 %v1464, %v1576
        %v1633 = vmul.f32 %v1465, %v1577
        %v1634 = vmul.f32 %v1466, %v1578
        %v1635 = vmul.f32 %v1467, %v1579
        %v1636 = vmul.f32 %v1468, %v1580
        %v1637 = vmul.f32 %v1469, %v1581
        %v1638 = vmul.f32 %v1470, %v1582
        %v1639 = vmul.f32 %v1471, %v1583
        %v1640 = vmul.f32 %v1472, %v1584
        %v1641 = vmul.f32 %v1473, %v1585
        %v1642 = vmul.f32 %v1474, %v1586
        %v1643 = vmul.f32 %v1475, %v1587
        %v1644 = vmul.f32 %v1476, %v1588
        %v1645 = vmul.f32 %v1477, %v1589
        %v1646 = vmul.f32 %v1478, %v1590
        %v1647 = vmul.f32 %v1479, %v1591
        %v1648 = vmul.f32 %v1480, %v1592
        %v1649 = vmul.f32 %v1593, 0.2003335
        %v1650 = vmul.f32 %v1594, 0.2003335
        %v1651 = vmul.f32 %v1595, 0.2003335
        %v1652 = vmul.f32 %v1596, 0.2003335
        %v1653 = vmul.f32 %v1597, 0.2003335
        %v1654 = vmul.f32 %v1598, 0.2003335
        %v1655 = vmul.f32 %v1599, 0.2003335
        %v1656 = vmul.f32 %v1600, 0.2003335
        %v1657 = vmul.f32 %v1601, 0.2003335
        %v1658 = vmul.f32 %v1602, 0.2003335
        %v1659 = vmul.f32 %v1603, 0.2003335
        %v1660 = vmul.f32 %v1604, 0.2003335
        %v1661 = vmul.f32 %v1605, 0.2003335
        %v1662 = vmul.f32 %v1606, 0.2003335
        %v1663 = vmul.f32 %v1607, 0.2003335
        %v1664 = vmul.f32 %v1608, 0.2003335
        %v1665 = vmul.f32 %v1609, 0.2003335
        %v1666 = vmul.f32 %v1610, 0.2003335
        %v1667 = vmul.f32 %v1611, 0.2003335
        %v1668 = vmul.f32 %v1612, 0.2003335
        %v1669 = vmul.f32 %v1613, 0.2003335
        %v1670 = vmul.f32 %v1614, 0.2003335
        %v1671 = vmul.f32 %v1615, 0.2003335
        %v1672 = vmul.f32 %v1616, 0.2003335
        %v1673 = vmul.f32 %v1617, 0.2003335
        %v1674 = vmul.f32 %v1618, 0.2003335
        %v1675 = vmul.f32 %v1619, 0.2003335
        %v1676 = vmul.f32 %v1620, 0.2003335
        %v1677 = vmul.f32 %v1621, 0.2003335
        %v1678 = vmul.f32 %v1622, 0.2003335
        %v1679 = vmul.f32 %v1623, 0.2003335
        %v1680 = vmul.f32 %v1624, 0.2003335
        %v1681 = vmul.f32 %v1625, 0.2003335
        %v1682 = vmul.f32 %v1626, 0.2003335
        %v1683 = vmul.f32 %v1627, 0.2003335
        %v1684 = vmul.f32 %v1628, 0.2003335
        %v1685 = vmul.f32 %v1629, 0.2003335
        %v1686 = vmul.f32 %v1630, 0.2003335
        %v1687 = vmul.f32 %v1631, 0.2003335
        %v1688 = vmul.f32 %v1632, 0.2003335
        %v1689 = vmul.f32 %v1633, 0.2003335
        %v1690 = vmul.f32 %v1634, 0.2003335
        %v1691 = vmul.f32 %v1635, 0.2003335
        %v1692 = vmul.f32 %v1636, 0.2003335
        %v1693 = vmul.f32 %v1637, 0.2003335
        %v1694 = vmul.f32 %v1638, 0.2003335
        %v1695 = vmul.f32 %v1639, 0.2003335
        %v1696 = vmul.f32 %v1640, 0.2003335
        %v1697 = vmul.f32 %v1641, 0.2003335
        %v1698 = vmul.f32 %v1642, 0.2003335
        %v1699 = vmul.f32 %v1643, 0.2003335
        %v1700 = vmul.f32 %v1644, 0.2003335
        %v1701 = vmul.f32 %v1645, 0.2003335
        %v1702 = vmul.f32 %v1646, 0.2003335
        %v1703 = vmul.f32 %v1647, 0.2003335
        %v1704 = vmul.f32 %v1648, 0.2003335
        %v1705 = vsel %vm354, %v1649, 0.0
        %v1706 = vsel %vm354, %v1650, 0.0
        %v1707 = vsel %vm354, %v1651, 0.0
        %v1708 = vsel %vm354, %v1652, 0.0
        %v1709 = vsel %vm354, %v1653, 0.0
        %v1710 = vsel %vm354, %v1654, 0.0
        %v1711 = vsel %vm354, %v1655, 0.0
        %v1712 = vsel %vm354, %v1656, 0.0
        %v1713 = vsel %vm355, %v1657, 0.0
        %v1714 = vsel %vm355, %v1658, 0.0
        %v1715 = vsel %vm355, %v1659, 0.0
        %v1716 = vsel %vm355, %v1660, 0.0
        %v1717 = vsel %vm355, %v1661, 0.0
        %v1718 = vsel %vm355, %v1662, 0.0
        %v1719 = vsel %vm355, %v1663, 0.0
        %v1720 = vsel %vm355, %v1664, 0.0
        %v1721 = vsel %vm356, %v1665, 0.0
        %v1722 = vsel %vm356, %v1666, 0.0
        %v1723 = vsel %vm356, %v1667, 0.0
        %v1724 = vsel %vm356, %v1668, 0.0
        %v1725 = vsel %vm356, %v1669, 0.0
        %v1726 = vsel %vm356, %v1670, 0.0
        %v1727 = vsel %vm356, %v1671, 0.0
        %v1728 = vsel %vm356, %v1672, 0.0
        %v1729 = vsel %vm357, %v1673, 0.0
        %v1730 = vsel %vm357, %v1674, 0.0
        %v1731 = vsel %vm357, %v1675, 0.0
        %v1732 = vsel %vm357, %v1676, 0.0
        %v1733 = vsel %vm357, %v1677, 0.0
        %v1734 = vsel %vm357, %v1678, 0.0
        %v1735 = vsel %vm357, %v1679, 0.0
        %v1736 = vsel %vm357, %v1680, 0.0
        %v1737 = vsel %vm358, %v1681, 0.0
        %v1738 = vsel %vm358, %v1682, 0.0
        %v1739 = vsel %vm358, %v1683, 0.0
        %v1740 = vsel %vm358, %v1684, 0.0
        %v1741 = vsel %vm358, %v1685, 0.0
        %v1742 = vsel %vm358, %v1686, 0.0
        %v1743 = vsel %vm358, %v1687, 0.0
        %v1744 = vsel %vm358, %v1688, 0.0
        %v1745 = vsel %vm359, %v1689, 0.0
        %v1746 = vsel %vm359, %v1690, 0.0
        %v1747 = vsel %vm359, %v1691, 0.0
        %v1748 = vsel %vm359, %v1692, 0.0
        %v1749 = vsel %vm359, %v1693, 0.0
        %v1750 = vsel %vm359, %v1694, 0.0
        %v1751 = vsel %vm359, %v1695, 0.0
        %v1752 = vsel %vm359, %v1696, 0.0
        %v1753 = vsel %vm360, %v1697, 0.0
        %v1754 = vsel %vm360, %v1698, 0.0
        %v1755 = vsel %vm360, %v1699, 0.0
        %v1756 = vsel %vm360, %v1700, 0.0
        %v1757 = vsel %vm360, %v1701, 0.0
        %v1758 = vsel %vm360, %v1702, 0.0
        %v1759 = vsel %vm360, %v1703, 0.0
        %v1760 = vsel %vm360, %v1704, 0.0
        %v1761 = vpack.c.bf16 %v1713, %v1705
        %v1762 = vpack.c.bf16 %v1714, %v1706
        %v1763 = vpack.c.bf16 %v1715, %v1707
        %v1764 = vpack.c.bf16 %v1716, %v1708
        %v1765 = vpack.c.bf16 %v1717, %v1709
        %v1766 = vpack.c.bf16 %v1718, %v1710
        %v1767 = vpack.c.bf16 %v1719, %v1711
        %v1768 = vpack.c.bf16 %v1720, %v1712
        %v1769 = vpack.c.bf16 %v1729, %v1721
        %v1770 = vpack.c.bf16 %v1730, %v1722
        %v1771 = vpack.c.bf16 %v1731, %v1723
        %v1772 = vpack.c.bf16 %v1732, %v1724
        %v1773 = vpack.c.bf16 %v1733, %v1725
        %v1774 = vpack.c.bf16 %v1734, %v1726
        %v1775 = vpack.c.bf16 %v1735, %v1727
        %v1776 = vpack.c.bf16 %v1736, %v1728
        %v1777 = vpack.c.bf16 %v1745, %v1737
        %v1778 = vpack.c.bf16 %v1746, %v1738
        %v1779 = vpack.c.bf16 %v1747, %v1739
        %v1780 = vpack.c.bf16 %v1748, %v1740
        %v1781 = vpack.c.bf16 %v1749, %v1741
        %v1782 = vpack.c.bf16 %v1750, %v1742
        %v1783 = vpack.c.bf16 %v1751, %v1743
        %v1784 = vpack.c.bf16 %v1752, %v1744
        %v1785 = vpack.c.bf16 %v1753, %v1753
        %v1786 = vpack.c.bf16 %v1754, %v1754
        %v1787 = vpack.c.bf16 %v1755, %v1755
        %v1788 = vpack.c.bf16 %v1756, %v1756
        %v1789 = vpack.c.bf16 %v1757, %v1757
        %v1790 = vpack.c.bf16 %v1758, %v1758
        %v1791 = vpack.c.bf16 %v1759, %v1759
        %v1792 = vpack.c.bf16 %v1760, %v1760
        %v1793 = vld [vmem:[#allocation2] sm:$0xff]
        %v1794 = vld [vmem:[#allocation2 + $0x8] sm:$0xff]
        %v1795 = vld [vmem:[#allocation2 + $0x10] sm:$0xff]
        %v1796 = vld [vmem:[#allocation2 + $0x18] sm:$0xff]
        %v1797 = vld [vmem:[#allocation2 + $0x20] sm:$0xff]
        %v1798 = vld [vmem:[#allocation2 + $0x28] sm:$0xff]
        %v1799 = vld [vmem:[#allocation2 + $0x30] sm:$0xff]
        %1800 = vmatprep.subr.bf16.mxu0 %v1762
        %1801 = vmatpush1.bf16.xpose.msra.mxu0 %v1761
        %1802 = vmatprep.subr.bf16.mxu0 %v1770
        %1803 = vmatpush1.bf16.xpose.msra.mxu0 %v1769
        %1804 = vmatprep.subr.bf16.mxu0 %v1778
        %1805 = vmatpush1.bf16.xpose.msra.mxu0 %v1777
        %1806 = vmatprep.subr.bf16.mxu0 %v1786
        %1807 = vmatpush1.bf16.xpose.msra.mxu0 %v1785
        %1808 = vmatprep.subr.bf16.mxu0 0
        %1809 = vmatpush1.bf16.xpose.msra.mxu0 0
        %1810 = vmatprep.subr.bf16.mxu0 0
        %1811 = vmatpush1.bf16.xpose.msra.mxu0 0
        %1812 = vmatprep.subr.bf16.mxu0 0
        %1813 = vmatpush1.bf16.xpose.msra.mxu0 0
        %1814 = vmatprep.subr.bf16.mxu0 0
        %1815 = vmatpush1.bf16.xpose.msra.mxu0 0
        %1816 = vmatprep.subr.bf16.mxu0 0
        %1817 = vmatpush1.bf16.xpose.msra.mxu0 0
        %1818 = vmatprep.subr.bf16.mxu0 0
        %1819 = vmatpush1.bf16.xpose.msra.mxu0 0
        %1820 = vmatprep.subr.bf16.mxu0 0
        %1821 = vmatpush1.bf16.xpose.msra.mxu0 0
        %1822 = vmatprep.subr.bf16.mxu0 0
        %1823 = vmatpush1.bf16.xpose.msra.mxu0 0
        %1824 = vmatprep.subr.bf16.mxu0 0
        %1825 = vmatpush1.bf16.xpose.msra.mxu0 0
        %1826 = vmatprep.subr.bf16.mxu0 0
        %1827 = vmatpush1.bf16.xpose.msra.mxu0 0
        %1828 = vmatprep.subr.bf16.mxu0 0
        %1829 = vmatpush1.bf16.xpose.msra.mxu0 0
        %1830 = vmatprep.subr.bf16.mxu0 0
        %1831 = vmatpush1.bf16.xpose.msra.mxu0 0
        %1832 = vmatprep.mubr.bf16.mxu0 %v1082
        %1833 = vmatmul.mubr.bf16.gmra.mrb[0].mxu0 %v1081
        %v1834 = vpop.f32.mrb[0].mxu0
        %v1835 = vadd.f32 0.0, %v1834
        %v1836 = vpop.f32.mrb[0].mxu0
        %v1837 = vpop.f32.mrb[0].mxu0
        %v1838 = vadd.f32 0.0, %v1837
        %v1839 = vpop.f32.mrb[0].mxu0
        %1840 = vmatprep.mubr.bf16.mxu0 %v1090
        %1841 = vmatmul.mubr.bf16.gmra.mrb[0].mxu0 %v1089
        %v1842 = vpop.f32.mrb[0].mxu0
        %v1843 = vadd.f32 0.0, %v1842
        %v1844 = vpop.f32.mrb[0].mxu0
        %v1845 = vpop.f32.mrb[0].mxu0
        %v1846 = vadd.f32 0.0, %v1845
        %v1847 = vpop.f32.mrb[0].mxu0
        %1848 = vmatprep.mubr.bf16.mxu0 %v1098
        %1849 = vmatmul.mubr.bf16.gmra.mrb[0].mxu0 %v1097
        %v1850 = vpop.f32.mrb[0].mxu0
        %v1851 = vadd.f32 0.0, %v1850
        %v1852 = vpop.f32.mrb[0].mxu0
        %v1853 = vpop.f32.mrb[0].mxu0
        %v1854 = vadd.f32 0.0, %v1853
        %v1855 = vpop.f32.mrb[0].mxu0
        %1856 = vmatprep.mubr.bf16.mxu0 %v1106
        %1857 = vmatmul.mubr.bf16.gmra.mrb[0].mxu0 %v1105
        %v1858 = vpop.f32.mrb[0].mxu0
        %v1859 = vadd.f32 0.0, %v1858
        %v1860 = vpop.f32.mrb[0].mxu0
        %v1861 = vpop.f32.mrb[0].mxu0
        %v1862 = vpop.f32.mrb[0].mxu0
        %1863 = vdwg.mxu0
        %1864 = vmatprep.subr.bf16.mxu0 %v1764
        %1865 = vmatpush1.bf16.xpose.msra.mxu0 %v1763
        %1866 = vmatprep.subr.bf16.mxu0 %v1772
        %1867 = vmatpush1.bf16.xpose.msra.mxu0 %v1771
        %1868 = vmatprep.subr.bf16.mxu0 %v1780
        %1869 = vmatpush1.bf16.xpose.msra.mxu0 %v1779
        %1870 = vmatprep.subr.bf16.mxu0 %v1788
        %1871 = vmatpush1.bf16.xpose.msra.mxu0 %v1787
        %1872 = vmatprep.subr.bf16.mxu0 0
        %1873 = vmatpush1.bf16.xpose.msra.mxu0 0
        %1874 = vmatprep.subr.bf16.mxu0 0
        %1875 = vmatpush1.bf16.xpose.msra.mxu0 0
        %1876 = vmatprep.subr.bf16.mxu0 0
        %1877 = vmatpush1.bf16.xpose.msra.mxu0 0
        %1878 = vmatprep.subr.bf16.mxu0 0
        %1879 = vmatpush1.bf16.xpose.msra.mxu0 0
        %1880 = vmatprep.subr.bf16.mxu0 0
        %1881 = vmatpush1.bf16.xpose.msra.mxu0 0
        %1882 = vmatprep.subr.bf16.mxu0 0
        %1883 = vmatpush1.bf16.xpose.msra.mxu0 0
        %1884 = vmatprep.subr.bf16.mxu0 0
        %1885 = vmatpush1.bf16.xpose.msra.mxu0 0
        %1886 = vmatprep.subr.bf16.mxu0 0
        %1887 = vmatpush1.bf16.xpose.msra.mxu0 0
        %1888 = vmatprep.subr.bf16.mxu0 0
        %1889 = vmatpush1.bf16.xpose.msra.mxu0 0
        %1890 = vmatprep.subr.bf16.mxu0 0
        %1891 = vmatpush1.bf16.xpose.msra.mxu0 0
        %1892 = vmatprep.subr.bf16.mxu0 0
        %1893 = vmatpush1.bf16.xpose.msra.mxu0 0
        %1894 = vmatprep.subr.bf16.mxu0 0
        %1895 = vmatpush1.bf16.xpose.msra.mxu0 0
        %1896 = vmatprep.mubr.bf16.mxu0 %v1084
        %1897 = vmatmul.mubr.bf16.gmra.mrb[0].mxu0 %v1083
        %v1898 = vpop.f32.mrb[0].mxu0
        %v1899 = vadd.f32 %v1835, %v1898
        %v1900 = vpop.f32.mrb[0].mxu0
        %v1901 = vpop.f32.mrb[0].mxu0
        %v1902 = vadd.f32 %v1838, %v1901
        %v1903 = vpop.f32.mrb[0].mxu0
        %1904 = vmatprep.mubr.bf16.mxu0 %v1092
        %1905 = vmatmul.mubr.bf16.gmra.mrb[0].mxu0 %v1091
        %v1906 = vpop.f32.mrb[0].mxu0
        %v1907 = vadd.f32 %v1843, %v1906
        %v1908 = vpop.f32.mrb[0].mxu0
        %v1909 = vpop.f32.mrb[0].mxu0
        %v1910 = vadd.f32 %v1846, %v1909
        %v1911 = vpop.f32.mrb[0].mxu0
        %1912 = vmatprep.mubr.bf16.mxu0 %v1100
        %1913 = vmatmul.mubr.bf16.gmra.mrb[0].mxu0 %v1099
        %v1914 = vpop.f32.mrb[0].mxu0
        %v1915 = vadd.f32 %v1851, %v1914
        %v1916 = vpop.f32.mrb[0].mxu0
        %v1917 = vpop.f32.mrb[0].mxu0
        %v1918 = vadd.f32 %v1854, %v1917
        %v1919 = vpop.f32.mrb[0].mxu0
        %1920 = vmatprep.mubr.bf16.mxu0 %v1108
        %1921 = vmatmul.mubr.bf16.gmra.mrb[0].mxu0 %v1107
        %v1922 = vpop.f32.mrb[0].mxu0
        %v1923 = vadd.f32 %v1859, %v1922
        %v1924 = vpop.f32.mrb[0].mxu0
        %v1925 = vpop.f32.mrb[0].mxu0
        %v1926 = vpop.f32.mrb[0].mxu0
        %1927 = vdwg.mxu0
        %1928 = vmatprep.subr.bf16.mxu0 %v1766
        %1929 = vmatpush1.bf16.xpose.msra.mxu0 %v1765
        %1930 = vmatprep.subr.bf16.mxu0 %v1774
        %1931 = vmatpush1.bf16.xpose.msra.mxu0 %v1773
        %1932 = vmatprep.subr.bf16.mxu0 %v1782
        %1933 = vmatpush1.bf16.xpose.msra.mxu0 %v1781
        %1934 = vmatprep.subr.bf16.mxu0 %v1790
        %1935 = vmatpush1.bf16.xpose.msra.mxu0 %v1789
        %1936 = vmatprep.subr.bf16.mxu0 0
        %1937 = vmatpush1.bf16.xpose.msra.mxu0 0
        %1938 = vmatprep.subr.bf16.mxu0 0
        %1939 = vmatpush1.bf16.xpose.msra.mxu0 0
        %1940 = vmatprep.subr.bf16.mxu0 0
        %1941 = vmatpush1.bf16.xpose.msra.mxu0 0
        %1942 = vmatprep.subr.bf16.mxu0 0
        %1943 = vmatpush1.bf16.xpose.msra.mxu0 0
        %1944 = vmatprep.subr.bf16.mxu0 0
        %1945 = vmatpush1.bf16.xpose.msra.mxu0 0
        %1946 = vmatprep.subr.bf16.mxu0 0
        %1947 = vmatpush1.bf16.xpose.msra.mxu0 0
        %1948 = vmatprep.subr.bf16.mxu0 0
        %1949 = vmatpush1.bf16.xpose.msra.mxu0 0
        %1950 = vmatprep.subr.bf16.mxu0 0
        %1951 = vmatpush1.bf16.xpose.msra.mxu0 0
        %1952 = vmatprep.subr.bf16.mxu0 0
        %1953 = vmatpush1.bf16.xpose.msra.mxu0 0
        %1954 = vmatprep.subr.bf16.mxu0 0
        %1955 = vmatpush1.bf16.xpose.msra.mxu0 0
        %1956 = vmatprep.subr.bf16.mxu0 0
        %1957 = vmatpush1.bf16.xpose.msra.mxu0 0
        %1958 = vmatprep.subr.bf16.mxu0 0
        %1959 = vmatpush1.bf16.xpose.msra.mxu0 0
        %1960 = vmatprep.mubr.bf16.mxu0 %v1086
        %1961 = vmatmul.mubr.bf16.gmra.mrb[0].mxu0 %v1085
        %v1962 = vpop.f32.mrb[0].mxu0
        %v1963 = vadd.f32 %v1899, %v1962
        %v1964 = vpop.f32.mrb[0].mxu0
        %v1965 = vpop.f32.mrb[0].mxu0
        %v1966 = vadd.f32 %v1902, %v1965
        %v1967 = vpop.f32.mrb[0].mxu0
        %1968 = vmatprep.mubr.bf16.mxu0 %v1094
        %1969 = vmatmul.mubr.bf16.gmra.mrb[0].mxu0 %v1093
        %v1970 = vpop.f32.mrb[0].mxu0
        %v1971 = vadd.f32 %v1907, %v1970
        %v1972 = vpop.f32.mrb[0].mxu0
        %v1973 = vpop.f32.mrb[0].mxu0
        %v1974 = vadd.f32 %v1910, %v1973
        %v1975 = vpop.f32.mrb[0].mxu0
        %1976 = vmatprep.mubr.bf16.mxu0 %v1102
        %1977 = vmatmul.mubr.bf16.gmra.mrb[0].mxu0 %v1101
        %v1978 = vpop.f32.mrb[0].mxu0
        %v1979 = vadd.f32 %v1915, %v1978
        %v1980 = vpop.f32.mrb[0].mxu0
        %v1981 = vpop.f32.mrb[0].mxu0
        %v1982 = vadd.f32 %v1918, %v1981
        %v1983 = vpop.f32.mrb[0].mxu0
        %1984 = vmatprep.mubr.bf16.mxu0 %v1110
        %1985 = vmatmul.mubr.bf16.gmra.mrb[0].mxu0 %v1109
        %v1986 = vpop.f32.mrb[0].mxu0
        %v1987 = vadd.f32 %v1923, %v1986
        %v1988 = vpop.f32.mrb[0].mxu0
        %v1989 = vpop.f32.mrb[0].mxu0
        %v1990 = vpop.f32.mrb[0].mxu0
        %1991 = vdwg.mxu0
        %1992 = vmatprep.subr.bf16.mxu0 %v1768
        %1993 = vmatpush1.bf16.xpose.msra.mxu0 %v1767
        %1994 = vmatprep.subr.bf16.mxu0 %v1776
        %1995 = vmatpush1.bf16.xpose.msra.mxu0 %v1775
        %1996 = vmatprep.subr.bf16.mxu0 %v1784
        %1997 = vmatpush1.bf16.xpose.msra.mxu0 %v1783
        %1998 = vmatprep.subr.bf16.mxu0 %v1792
        %1999 = vmatpush1.bf16.xpose.msra.mxu0 %v1791
        %2000 = vmatprep.subr.bf16.mxu0 0
        %2001 = vmatpush1.bf16.xpose.msra.mxu0 0
        %2002 = vmatprep.subr.bf16.mxu0 0
        %2003 = vmatpush1.bf16.xpose.msra.mxu0 0
        %2004 = vmatprep.subr.bf16.mxu0 0
        %2005 = vmatpush1.bf16.xpose.msra.mxu0 0
        %2006 = vmatprep.subr.bf16.mxu0 0
        %2007 = vmatpush1.bf16.xpose.msra.mxu0 0
        %2008 = vmatprep.subr.bf16.mxu0 0
        %2009 = vmatpush1.bf16.xpose.msra.mxu0 0
        %2010 = vmatprep.subr.bf16.mxu0 0
        %2011 = vmatpush1.bf16.xpose.msra.mxu0 0
        %2012 = vmatprep.subr.bf16.mxu0 0
        %2013 = vmatpush1.bf16.xpose.msra.mxu0 0
        %2014 = vmatprep.subr.bf16.mxu0 0
        %2015 = vmatpush1.bf16.xpose.msra.mxu0 0
        %2016 = vmatprep.subr.bf16.mxu0 0
        %2017 = vmatpush1.bf16.xpose.msra.mxu0 0
        %2018 = vmatprep.subr.bf16.mxu0 0
        %2019 = vmatpush1.bf16.xpose.msra.mxu0 0
        %2020 = vmatprep.subr.bf16.mxu0 0
        %2021 = vmatpush1.bf16.xpose.msra.mxu0 0
        %2022 = vmatprep.subr.bf16.mxu0 0
        %2023 = vmatpush1.bf16.xpose.msra.mxu0 0
        %2024 = vmatprep.mubr.bf16.mxu0 %v1088
        %2025 = vmatmul.mubr.bf16.gmra.mrb[0].mxu0 %v1087
        %v2026 = vpop.f32.mrb[0].mxu0
        %v2027 = vadd.f32 %v1963, %v2026
        %v2028 = vpop.f32.mrb[0].mxu0
        %v2029 = vpop.f32.mrb[0].mxu0
        %v2030 = vadd.f32 %v1966, %v2029
        %v2031 = vpop.f32.mrb[0].mxu0
        %2032 = vmatprep.mubr.bf16.mxu0 %v1096
        %2033 = vmatmul.mubr.bf16.gmra.mrb[0].mxu0 %v1095
        %v2034 = vpop.f32.mrb[0].mxu0
        %v2035 = vadd.f32 %v1971, %v2034
        %v2036 = vpop.f32.mrb[0].mxu0
        %v2037 = vpop.f32.mrb[0].mxu0
        %v2038 = vadd.f32 %v1974, %v2037
        %v2039 = vpop.f32.mrb[0].mxu0
        %2040 = vmatprep.mubr.bf16.mxu0 %v1104
        %2041 = vmatmul.mubr.bf16.gmra.mrb[0].mxu0 %v1103
        %v2042 = vpop.f32.mrb[0].mxu0
        %v2043 = vadd.f32 %v1979, %v2042
        %v2044 = vpop.f32.mrb[0].mxu0
        %v2045 = vpop.f32.mrb[0].mxu0
        %v2046 = vadd.f32 %v1982, %v2045
        %v2047 = vpop.f32.mrb[0].mxu0
        %2048 = vmatprep.mubr.bf16.mxu0 %v1112
        %2049 = vmatmul.mubr.bf16.gmra.mrb[0].mxu0 %v1111
        %v2050 = vpop.f32.mrb[0].mxu0
        %v2051 = vadd.f32 %v1987, %v2050
        %v2052 = vpop.f32.mrb[0].mxu0
        %v2053 = vpop.f32.mrb[0].mxu0
        %v2054 = vpop.f32.mrb[0].mxu0
        %2055 = vdwg.mxu0
        %v2056 = vadd.f32 %v1793, %v2027
        %v2057 = vadd.f32 %v1794, %v2030
        %v2058 = vadd.f32 %v1795, %v2035
        %v2059 = vadd.f32 %v1796, %v2038
        %v2060 = vadd.f32 %v1797, %v2043
        %v2061 = vadd.f32 %v1798, %v2046
        %v2062 = vadd.f32 %v1799, %v2051
        %vm2063 = vcmask 457728
        %2064 = vst.msk [vmem:[#allocation2] sm:$0xff] %vm2063, %v2056
        %2065 = vst.msk [vmem:[#allocation2 + $0x8] sm:$0xff] %vm2063, %v2057
        %2066 = vst.msk [vmem:[#allocation2 + $0x10] sm:$0xff] %vm2063, %v2058
        %2067 = vst.msk [vmem:[#allocation2 + $0x18] sm:$0xff] %vm2063, %v2059
        %2068 = vst.msk [vmem:[#allocation2 + $0x20] sm:$0xff] %vm2063, %v2060
        %2069 = vst.msk [vmem:[#allocation2 + $0x28] sm:$0xff] %vm2063, %v2061
        %2070 = vst.msk [vmem:[#allocation2 + $0x30] sm:$0xff] %vm2063, %v2062
        // Predicated region
        $region41: #{tpu_custom_call.1} parent=27 // pred_check
          %p2071 = pneg %p221
        $region42: #{tpu_custom_call.1} parent=27 // pred_check_branch
          %2073 = sbr.rel (%p2071) target = $region44
        $region43: #{tpu_custom_call.1} parent=27 // pred_region
          %v2074 = vld [vmem:[#allocation2] sm:$0xff]
          %v2075 = vld [vmem:[#allocation2 + $0x8] sm:$0xff]
          %v2076 = vld [vmem:[#allocation2 + $0x10] sm:$0xff]
          %v2077 = vld [vmem:[#allocation2 + $0x18] sm:$0xff]
          %v2078 = vld [vmem:[#allocation2 + $0x20] sm:$0xff]
          %v2079 = vld [vmem:[#allocation2 + $0x28] sm:$0xff]
          %v2080 = vld [vmem:[#allocation2 + $0x30] sm:$0xff]
          %2081 = vst.msk [vmem:[%s217] sm:$0xff] %vm2063, %v2074
          %2082 = vst.msk [vmem:[%s217 + $0x8] sm:$0xff] %vm2063, %v2075
          %2083 = vst.msk [vmem:[%s217 + $0x10] sm:$0xff] %vm2063, %v2076
          %2084 = vst.msk [vmem:[%s217 + $0x18] sm:$0xff] %vm2063, %v2077
          %2085 = vst.msk [vmem:[%s217 + $0x20] sm:$0xff] %vm2063, %v2078
          %2086 = vst.msk [vmem:[%s217 + $0x28] sm:$0xff] %vm2063, %v2079
          %2087 = vst.msk [vmem:[%s217 + $0x30] sm:$0xff] %vm2063, %v2080
        $region44: #{tpu_custom_call.1} parent=27 // pred_fallthru
          _
        %s2088 = sand.u32 %s98, 1
        %s2089 = scalar_lea.sflag [#allocation5], %s2088
        %s2090 = sand.u32 %s98, 1
        %s2091 = smul.addr %s2090, 56
        %s2092 = scalar_lea.vmem [#allocation8], %s2091
        // Predicated region
        $region45: #{tpu_custom_call.1} parent=27 // pred_check
          %p2093 = pneg %p108
        $region46: #{tpu_custom_call.1} parent=27 // pred_check_branch
          %2095 = sbr.rel (%p2093) target = $region48
        $region47: #{tpu_custom_call.1} parent=27 // pred_region
          %s2097 = ssub.s32 896, 896
          %2098 = vsyncadd %s2089, %s2097
          %s2099 = smul.addr %s26, 7
          %s2100 = smul.addr %s2099, 128
          %s2101 = scalar_lea.hbm %s2, %s2100
          %s2102 = sshll.u32 %s2092, 4
          %s2103 = int_to_ptr.vmem [resolvable:$true] %s2102
          %2108 = dma.vmem_to_hbm [thread:$0]  %s2103, 896, %s2101, %s2089, 128, 128, 8
        $region48: #{tpu_custom_call.1} parent=27 // pred_fallthru
          _
      $region28: #{tpu_custom_call.1} parent=5 // pred_fallthru
        _
      %p2109 = scmp.le.s32.totalorder 2, %s17
      // Predicated region
      $region49: #{tpu_custom_call.1} parent=5 // pred_check
        %p2110 = pneg %p2109
      $region50: #{tpu_custom_call.1} parent=5 // pred_check_branch
        %2112 = sbr.rel (%p2110) target = $region52
      $region51: #{tpu_custom_call.1} parent=5 // pred_region
        %s2113 = ssub.s32 %s17, 2
        // Predicated region
        $region53: #{tpu_custom_call.1} parent=51 // pred_check
          %p2114 = pneg %p114
        $region54: #{tpu_custom_call.1} parent=51 // pred_check_branch
          %2116 = sbr.rel (%p2114) target = $region56
        $region55: #{tpu_custom_call.1} parent=51 // pred_region
          %s2117 = sand.u32 %s99, 1
          %s2118 = scalar_lea.sflag [#allocation5], %s2117
          %s2119 = sand.u32 %s99, 1
          %s2120 = smul.addr %s2119, 56
          %s2121 = scalar_lea.vmem [#allocation8], %s2120
          %2122 = dma.done %s2118, 896
        $region56: #{tpu_custom_call.1} parent=51 // pred_fallthru
          _
      $region52: #{tpu_custom_call.1} parent=5 // pred_fallthru
        _
    $region6: #{tpu_custom_call.1} parent=1 // loop_footer
      %s21 = sadd.s32 1, %s17
    $region7: #{tpu_custom_call.1} parent=1 // loop_footer_branch
      %16 = sbr.rel target = $region3
    $region8: #{tpu_custom_call.1} parent=1 // loop_exit
      _
    %2123 = vsyncpa [#allocation4], 1
    %s2124 = scalar_lea.sflag [#allocation4], 1
    %2125 = vsyncpa %s2124, 1
    %2126 = vsyncpa [#allocation7], 1
    %s2127 = scalar_lea.sflag [#allocation7], 1
    %2128 = vsyncpa %s2127, 1
    %2129 = vsyncpa [#allocation5], 1
    %s2130 = scalar_lea.sflag [#allocation5], 1
    %2131 = vsyncpa %s2130, 1

</llo_original>
